<compile_context>
chip_gen: v5e
topology: v5e:2x2
jax: 0.10.0
libtpu: 0.0.40
codegen_flags: <defaults>
</compile_context>

<pallas_src>
import functools

import jax
import jax.numpy as jnp
import numpy as np
from jax.experimental import pallas as pl
from jax.experimental.pallas import tpu as pltpu


def output_conv_kernel(x_ref,    # VMEM (b_tile, H+2, W+2, C_in) bf16  padded NHWC images
                       w_ref,    # VMEM (9*C_in, C_pad)          bf16  fused [conv1|conv2|0-pad] weights
                       b_ref,    # VMEM (1, C_pad)               f32   fused bias (0-padded)
                       o_ref,    # VMEM (b_tile, H*W, C_pad)     f32   lane-dense fused output
                       *, H, W, C_in):
    bt = x_ref.shape[0]
    M = bt * H * W
    xp = x_ref[...]                                          # (bt, H+2, W+2, C_in)

    # 3x3 conv as 9 shifted-slice matmuls accumulated in f32 (no im2col scratch,
    # no masked stores; slices feed the MXU directly, accumulation on MXU/VPU path).
    acc = None
    t = 0
    for dy in range(3):
        for dx in range(3):
            xs = xp[:, dy:dy + H, dx:dx + W, :].reshape(M, C_in)
            part = jnp.dot(xs, w_ref[t * C_in:(t + 1) * C_in, :],
                           preferred_element_type=jnp.float32)
            acc = part if acc is None else acc + part
            t += 1

    acc = acc + b_ref[...]                                   # single broadcast bias add
    o_ref[...] = acc.reshape(bt, H * W, acc.shape[-1]).astype(o_ref.dtype)


@functools.partial(jax.jit, static_argnames=("num_boxes",))
def output_conv_pallas(x, w1, b1, w2, b2, *, num_boxes):
    """x: (B, C_in, H, W); w*: (C_out, C_in, 3, 3); b*: (C_out,).

    Returns [class_out (B, H*W*num_boxes, C1/num_boxes),
             box_out   (B, H*W*num_boxes, C2/num_boxes)]  (matches flatten_conv).
    """
    B, C_in, H, W = x.shape
    C1 = w1.shape[0]
    C2 = w2.shape[0]
    C_fused = C1 + C2
    C_pad = ((C_fused + 127) // 128) * 128                   # lane-dense output stores

    # Images per grid step: target M = b_tile*H*W >= ~1024 rows, but keep >= 2 grid
    # steps when B > 1 so both v7x TensorCores can be used.
    b_tile = max(1, min(B, max(1, 1024 // (H * W))))
    if B > 1 and pl.cdiv(B, b_tile) < 2:
        b_tile = max(1, (B + 1) // 2)
    num_steps = pl.cdiv(B, b_tile)
    B_pad = num_steps * b_tile

    # --- grid-invariant layout prep, done once per call in the wrapper (bf16) ---
    # (C_out, C_in, 3, 3) -> (3, 3, C_in, C_out) -> (9*C_in, C_out): matches tap order
    w1_mat = jnp.transpose(w1, (2, 3, 1, 0)).reshape(9 * C_in, C1)
    w2_mat = jnp.transpose(w2, (2, 3, 1, 0)).reshape(9 * C_in, C2)
    w_mat = jnp.concatenate([w1_mat, w2_mat], axis=1)                    # fuse N
    w_mat = jnp.pad(w_mat, ((0, 0), (0, C_pad - C_fused))).astype(jnp.bfloat16)
    b_row = jnp.pad(jnp.concatenate([b1, b2]), (0, C_pad - C_fused))
    b_row = b_row.astype(jnp.float32).reshape(1, C_pad)

    x_nhwc = jnp.transpose(x.astype(jnp.bfloat16), (0, 2, 3, 1))         # (B, H, W, C_in)
    x_pad = jnp.pad(x_nhwc, ((0, B_pad - B), (1, 1), (1, 1), (0, 0)))    # halo + batch pad

    kernel = functools.partial(output_conv_kernel, H=H, W=W, C_in=C_in)

    out = pl.pallas_call(
        kernel,
        grid=(num_steps,),
        in_specs=[
            pl.BlockSpec((b_tile, H + 2, W + 2, C_in), lambda i: (i, 0, 0, 0)),
            pl.BlockSpec((9 * C_in, C_pad), lambda i: (0, 0)),           # shared weights
            pl.BlockSpec((1, C_pad), lambda i: (0, 0)),                  # shared bias
        ],
        out_specs=pl.BlockSpec((b_tile, H * W, C_pad), lambda i: (i, 0, 0)),
        out_shape=jax.ShapeDtypeStruct((B_pad, H * W, C_pad), jnp.float32),
        compiler_params=pltpu.CompilerParams(dimension_semantics=("parallel",)),
    )(x_pad, w_mat, b_row)

    out = out[:B]                                             # drop batch padding
    # flatten_conv: channels-last kernel output -> pure row-major reshape
    class_out = out[:, :, :C1].reshape(B, H * W * num_boxes, C1 // num_boxes)
    box_out = out[:, :, C1:C1 + C2].reshape(B, H * W * num_boxes, C2 // num_boxes)
    return [class_out, box_out]


# ----------------------------- numpy reference -----------------------------
def _conv2d_3x3_ref(x, w, b):
    """x: (B, Cin, H, W), w: (Cout, Cin, 3, 3), b: (Cout,)  -> (B, Cout, H, W)."""
    B, Cin, H, W = x.shape
    Cout = w.shape[0]
    xp = np.pad(x, ((0, 0), (0, 0), (1, 1), (1, 1)))
    out = np.zeros((B, Cout, H, W), dtype=np.float64)
    for dy in range(3):
        for dx in range(3):
            out += np.einsum("bchw,oc->bohw",
                             xp[:, :, dy:dy + H, dx:dx + W], w[:, :, dy, dx])
    return (out + b[None, :, None, None]).astype(np.float32)


def _flatten_conv_ref(y, num_boxes):
    B, C, H, W = y.shape
    return np.transpose(y, (0, 2, 3, 1)).reshape(B, -1, C // num_boxes)


if __name__ == "__main__":
    # anchor config from the original script -> num_boxes = 9
    anchor_ratios = [(1.0, 1.0), (1.0, 0.5), (0.5, 1.0)]
    anchor_zooms = [0.7, 1.0, 1.3]
    anchor_scales = [(z * h, z * w) for z in anchor_zooms for h, w in anchor_ratios]
    num_boxes = len(anchor_scales)                 # 9
    id_cat = {0: "cls0", 1: "cls1", 2: "cls2", 3: "cls3"}   # 4 categories
    n_classes = len(id_cat) + 1                    # +1 background -> 5

    B, C_in, H, W = 2, 4, 16, 16
    C1 = n_classes * num_boxes                     # 45
    C2 = 4 * num_boxes                             # 36

    key = jax.random.PRNGKey(0)
    kx, kw1, kb1, kw2, kb2 = jax.random.split(key, 5)
    bound = 1.0 / np.sqrt(C_in * 9)                # PyTorch conv default init range
    x = jax.random.normal(kx, (B, C_in, H, W), jnp.float32)
    w1 = jax.random.uniform(kw1, (C1, C_in, 3, 3), jnp.float32, -bound, bound)
    b1 = jax.random.uniform(kb1, (C1,), jnp.float32, -bound, bound)
    w2 = jax.random.uniform(kw2, (C2, C_in, 3, 3), jnp.float32, -bound, bound)
    b2 = jax.random.uniform(kb2, (C2,), jnp.float32, -bound, bound)

    class_out, box_out = output_conv_pallas(x, w1, b1, w2, b2, num_boxes=num_boxes)
    jax.block_until_ready(class_out)
    jax.block_until_ready(box_out)

    # Reference computed on the SAME bf16-rounded inputs/weights (f64 accumulation)
    # so a tight tolerance validates indexing/layout exactly, independent of the
    # bf16 cast adopted for performance.
    xr = np.asarray(x.astype(jnp.bfloat16).astype(jnp.float32))
    w1r = np.asarray(w1.astype(jnp.bfloat16).astype(jnp.float32))
    w2r = np.asarray(w2.astype(jnp.bfloat16).astype(jnp.float32))
    ref_cls = _flatten_conv_ref(_conv2d_3x3_ref(xr, w1r, np.asarray(b1)), num_boxes)
    ref_box = _flatten_conv_ref(_conv2d_3x3_ref(xr, w2r, np.asarray(b2)), num_boxes)

    assert class_out.shape == (B, H * W * num_boxes, n_classes)
    assert box_out.shape == (B, H * W * num_boxes, 4)
    np.testing.assert_allclose(np.asarray(class_out), ref_cls, rtol=1e-5, atol=1e-5)
    np.testing.assert_allclose(np.asarray(box_out), ref_box, rtol=1e-5, atol=1e-5)

    print("KERNEL_OK")
</pallas_src>

<mosaic_0001>
module attributes {stable_mosaic.version = 11 : i64} {
  func.func @output_conv_kernel(%arg0: i32, %arg1: memref<1x18x18x4xbf16, #tpu.memory_space<vmem>>, %arg2: memref<36x128xbf16, #tpu.memory_space<vmem>>, %arg3: memref<1x128xf32, #tpu.memory_space<vmem>>, %arg4: memref<1x256x128xf32, #tpu.memory_space<vmem>>) attributes {dimension_semantics = [#tpu.dimension_semantics<parallel>], iteration_bounds = array<i64: 2>, scalar_prefetch = 0 : i64, scratch_operands = 0 : i64, tpu.core_type = #tpu.core_type<tc>, window_params = [{transform_indices = @transform_0, window_bounds = array<i64: 1, 18, 18, 4>}, {pipeline_mode = #tpu.pipeline_mode<synchronous>, transform_indices = @transform_1, window_bounds = array<i64: 36, 128>}, {pipeline_mode = #tpu.pipeline_mode<synchronous>, transform_indices = @transform_2, window_bounds = array<i64: 1, 128>}, {transform_indices = @transform_3, window_bounds = array<i64: 1, 256, 128>}]} {
    %c0 = arith.constant 0 : index
    %c0_0 = arith.constant 0 : index
    %c0_1 = arith.constant 0 : index
    %c0_2 = arith.constant 0 : index
    %0 = vector.load %arg1[%c0, %c0_0, %c0_1, %c0_2] : memref<1x18x18x4xbf16, #tpu.memory_space<vmem>>, vector<1x18x18x4xbf16>
    %1 = vector.extract_strided_slice %0 {offsets = [0, 0, 0, 0], sizes = [1, 16, 16, 4], strides = [1, 1, 1, 1]} : vector<1x18x18x4xbf16> to vector<1x16x16x4xbf16>
    %2 = vector.shape_cast %1 : vector<1x16x16x4xbf16> to vector<256x4xbf16>
    %c0_3 = arith.constant 0 : index
    %c0_4 = arith.constant 0 : index
    %3 = vector.load %arg2[%c0_3, %c0_4] : memref<36x128xbf16, #tpu.memory_space<vmem>>, vector<4x128xbf16>
    %cst = arith.constant dense<0.000000e+00> : vector<256x128xf32>
    %4 = tpu.matmul %2, %3, %cst {dimension_numbers = #tpu.dot_dimension_numbers<[1], [0], [0], [1], [0, 0, 1, 1], [], []>} : vector<256x4xbf16>, vector<4x128xbf16>, vector<256x128xf32> -> vector<256x128xf32>
    %5 = vector.extract_strided_slice %0 {offsets = [0, 0, 1, 0], sizes = [1, 16, 16, 4], strides = [1, 1, 1, 1]} : vector<1x18x18x4xbf16> to vector<1x16x16x4xbf16>
    %6 = vector.shape_cast %5 : vector<1x16x16x4xbf16> to vector<256x4xbf16>
    %c4 = arith.constant 4 : index
    %c0_5 = arith.constant 0 : index
    %7 = vector.load %arg2[%c4, %c0_5] : memref<36x128xbf16, #tpu.memory_space<vmem>>, vector<4x128xbf16>
    %cst_6 = arith.constant dense<0.000000e+00> : vector<256x128xf32>
    %8 = tpu.matmul %6, %7, %cst_6 {dimension_numbers = #tpu.dot_dimension_numbers<[1], [0], [0], [1], [0, 0, 1, 1], [], []>} : vector<256x4xbf16>, vector<4x128xbf16>, vector<256x128xf32> -> vector<256x128xf32>
    %9 = arith.addf %4, %8 : vector<256x128xf32>
    %10 = vector.extract_strided_slice %0 {offsets = [0, 0, 2, 0], sizes = [1, 16, 16, 4], strides = [1, 1, 1, 1]} : vector<1x18x18x4xbf16> to vector<1x16x16x4xbf16>
    %11 = vector.shape_cast %10 : vector<1x16x16x4xbf16> to vector<256x4xbf16>
    %c8 = arith.constant 8 : index
    %c0_7 = arith.constant 0 : index
    %12 = vector.load %arg2[%c8, %c0_7] : memref<36x128xbf16, #tpu.memory_space<vmem>>, vector<4x128xbf16>
    %cst_8 = arith.constant dense<0.000000e+00> : vector<256x128xf32>
    %13 = tpu.matmul %11, %12, %cst_8 {dimension_numbers = #tpu.dot_dimension_numbers<[1], [0], [0], [1], [0, 0, 1, 1], [], []>} : vector<256x4xbf16>, vector<4x128xbf16>, vector<256x128xf32> -> vector<256x128xf32>
    %14 = arith.addf %9, %13 : vector<256x128xf32>
    %15 = vector.extract_strided_slice %0 {offsets = [0, 1, 0, 0], sizes = [1, 16, 16, 4], strides = [1, 1, 1, 1]} : vector<1x18x18x4xbf16> to vector<1x16x16x4xbf16>
    %16 = vector.shape_cast %15 : vector<1x16x16x4xbf16> to vector<256x4xbf16>
    %c12 = arith.constant 12 : index
    %c0_9 = arith.constant 0 : index
    %17 = vector.load %arg2[%c12, %c0_9] : memref<36x128xbf16, #tpu.memory_space<vmem>>, vector<4x128xbf16>
    %cst_10 = arith.constant dense<0.000000e+00> : vector<256x128xf32>
    %18 = tpu.matmul %16, %17, %cst_10 {dimension_numbers = #tpu.dot_dimension_numbers<[1], [0], [0], [1], [0, 0, 1, 1], [], []>} : vector<256x4xbf16>, vector<4x128xbf16>, vector<256x128xf32> -> vector<256x128xf32>
    %19 = arith.addf %14, %18 : vector<256x128xf32>
    %20 = vector.extract_strided_slice %0 {offsets = [0, 1, 1, 0], sizes = [1, 16, 16, 4], strides = [1, 1, 1, 1]} : vector<1x18x18x4xbf16> to vector<1x16x16x4xbf16>
    %21 = vector.shape_cast %20 : vector<1x16x16x4xbf16> to vector<256x4xbf16>
    %c16 = arith.constant 16 : index
    %c0_11 = arith.constant 0 : index
    %22 = vector.load %arg2[%c16, %c0_11] : memref<36x128xbf16, #tpu.memory_space<vmem>>, vector<4x128xbf16>
    %cst_12 = arith.constant dense<0.000000e+00> : vector<256x128xf32>
    %23 = tpu.matmul %21, %22, %cst_12 {dimension_numbers = #tpu.dot_dimension_numbers<[1], [0], [0], [1], [0, 0, 1, 1], [], []>} : vector<256x4xbf16>, vector<4x128xbf16>, vector<256x128xf32> -> vector<256x128xf32>
    %24 = arith.addf %19, %23 : vector<256x128xf32>
    %25 = vector.extract_strided_slice %0 {offsets = [0, 1, 2, 0], sizes = [1, 16, 16, 4], strides = [1, 1, 1, 1]} : vector<1x18x18x4xbf16> to vector<1x16x16x4xbf16>
    %26 = vector.shape_cast %25 : vector<1x16x16x4xbf16> to vector<256x4xbf16>
    %c20 = arith.constant 20 : index
    %c0_13 = arith.constant 0 : index
    %27 = vector.load %arg2[%c20, %c0_13] : memref<36x128xbf16, #tpu.memory_space<vmem>>, vector<4x128xbf16>
    %cst_14 = arith.constant dense<0.000000e+00> : vector<256x128xf32>
    %28 = tpu.matmul %26, %27, %cst_14 {dimension_numbers = #tpu.dot_dimension_numbers<[1], [0], [0], [1], [0, 0, 1, 1], [], []>} : vector<256x4xbf16>, vector<4x128xbf16>, vector<256x128xf32> -> vector<256x128xf32>
    %29 = arith.addf %24, %28 : vector<256x128xf32>
    %30 = vector.extract_strided_slice %0 {offsets = [0, 2, 0, 0], sizes = [1, 16, 16, 4], strides = [1, 1, 1, 1]} : vector<1x18x18x4xbf16> to vector<1x16x16x4xbf16>
    %31 = vector.shape_cast %30 : vector<1x16x16x4xbf16> to vector<256x4xbf16>
    %c24 = arith.constant 24 : index
    %c0_15 = arith.constant 0 : index
    %32 = vector.load %arg2[%c24, %c0_15] : memref<36x128xbf16, #tpu.memory_space<vmem>>, vector<4x128xbf16>
    %cst_16 = arith.constant dense<0.000000e+00> : vector<256x128xf32>
    %33 = tpu.matmul %31, %32, %cst_16 {dimension_numbers = #tpu.dot_dimension_numbers<[1], [0], [0], [1], [0, 0, 1, 1], [], []>} : vector<256x4xbf16>, vector<4x128xbf16>, vector<256x128xf32> -> vector<256x128xf32>
    %34 = arith.addf %29, %33 : vector<256x128xf32>
    %35 = vector.extract_strided_slice %0 {offsets = [0, 2, 1, 0], sizes = [1, 16, 16, 4], strides = [1, 1, 1, 1]} : vector<1x18x18x4xbf16> to vector<1x16x16x4xbf16>
    %36 = vector.shape_cast %35 : vector<1x16x16x4xbf16> to vector<256x4xbf16>
    %c28 = arith.constant 28 : index
    %c0_17 = arith.constant 0 : index
    %37 = vector.load %arg2[%c28, %c0_17] : memref<36x128xbf16, #tpu.memory_space<vmem>>, vector<4x128xbf16>
    %cst_18 = arith.constant dense<0.000000e+00> : vector<256x128xf32>
    %38 = tpu.matmul %36, %37, %cst_18 {dimension_numbers = #tpu.dot_dimension_numbers<[1], [0], [0], [1], [0, 0, 1, 1], [], []>} : vector<256x4xbf16>, vector<4x128xbf16>, vector<256x128xf32> -> vector<256x128xf32>
    %39 = arith.addf %34, %38 : vector<256x128xf32>
    %40 = vector.extract_strided_slice %0 {offsets = [0, 2, 2, 0], sizes = [1, 16, 16, 4], strides = [1, 1, 1, 1]} : vector<1x18x18x4xbf16> to vector<1x16x16x4xbf16>
    %41 = vector.shape_cast %40 : vector<1x16x16x4xbf16> to vector<256x4xbf16>
    %c32 = arith.constant 32 : index
    %c0_19 = arith.constant 0 : index
    %42 = vector.load %arg2[%c32, %c0_19] : memref<36x128xbf16, #tpu.memory_space<vmem>>, vector<4x128xbf16>
    %cst_20 = arith.constant dense<0.000000e+00> : vector<256x128xf32>
    %43 = tpu.matmul %41, %42, %cst_20 {dimension_numbers = #tpu.dot_dimension_numbers<[1], [0], [0], [1], [0, 0, 1, 1], [], []>} : vector<256x4xbf16>, vector<4x128xbf16>, vector<256x128xf32> -> vector<256x128xf32>
    %44 = arith.addf %39, %43 : vector<256x128xf32>
    %c0_21 = arith.constant 0 : index
    %c0_22 = arith.constant 0 : index
    %45 = vector.load %arg3[%c0_21, %c0_22] : memref<1x128xf32, #tpu.memory_space<vmem>>, vector<1x128xf32>
    %46 = vector.broadcast %45 : vector<1x128xf32> to vector<256x128xf32>
    %47 = arith.addf %44, %46 : vector<256x128xf32>
    %48 = vector.shape_cast %47 : vector<256x128xf32> to vector<1x256x128xf32>
    %c0_23 = arith.constant 0 : index
    %c0_24 = arith.constant 0 : index
    %c0_25 = arith.constant 0 : index
    %49 = vector.load %arg4[%c0_23, %c0_24, %c0_25] : memref<1x256x128xf32, #tpu.memory_space<vmem>>, vector<1x256x128xf32>
    tpu.vector_store %arg4[%c0_23, %c0_24, %c0_25], %48 {strides = array<i32>} : memref<1x256x128xf32, #tpu.memory_space<vmem>>, vector<1x256x128xf32>,
    return
  }
  func.func @transform_0(%arg0: i32) -> (i32, i32, i32, i32) {
    %c0_i32 = arith.constant 0 : i32
    %c0_i32_0 = arith.constant 0 : i32
    %c0_i32_1 = arith.constant 0 : i32
    %c0_i32_2 = arith.constant 0 : i32
    return %arg0, %c0_i32, %c0_i32_0, %c0_i32_1 : i32, i32, i32, i32
  }
  func.func @transform_1(%arg0: i32) -> (i32, i32) {
    %c0_i32 = arith.constant 0 : i32
    %c0_i32_0 = arith.constant 0 : i32
    %c0_i32_1 = arith.constant 0 : i32
    return %c0_i32, %c0_i32_0 : i32, i32
  }
  func.func @transform_2(%arg0: i32) -> (i32, i32) {
    %c0_i32 = arith.constant 0 : i32
    %c0_i32_0 = arith.constant 0 : i32
    %c0_i32_1 = arith.constant 0 : i32
    return %c0_i32, %c0_i32_0 : i32, i32
  }
  func.func @transform_3(%arg0: i32) -> (i32, i32, i32) {
    %c0_i32 = arith.constant 0 : i32
    %c0_i32_0 = arith.constant 0 : i32
    %c0_i32_1 = arith.constant 0 : i32
    return %arg0, %c0_i32, %c0_i32_0 : i32, i32, i32
  }
}

</mosaic_0001>

<llo_original>
// kernel: output_conv_pallas.1
$region0: #{output_conv_pallas.1}
  #allocation0 [shape = 'u32[]', space=smem, size = 0x4, offset = 0x4, fixed_abs, tag = 'smem constant byte address 0x4 - core index']
  #allocation1 [shape = 'u32[72,128]{1,0:T(1,128)}', space=vmem, size = 0x9000, scoped, tag = 'internal scratch']
  %s0 = inlined_call_operand.vmem [shape: bf16[2,18,18,4], index: 0, kind: input, shape index: {}]
  %s1 = inlined_call_operand.vmem [shape: bf16[36,128], index: 1, kind: input, shape index: {}]
  %s2 = inlined_call_operand.vmem [shape: f32[1,128], index: 2, kind: input, shape index: {}]
  %s3 = inlined_call_operand.vmem [shape: f32[2,256,128], index: 3, kind: output, shape index: {}]
  %s4 = sld [smem:[#allocation0]]
  $region45: #{output_conv_pallas.1} parent=0
    _
  %s6 = ssub.s32 1, %s4
  %s7 = scalar_select 0, %s6, %s4
  loop: start=0, step=1, limit=4
  $region2: #{output_conv_pallas.1} parent=0 // loop_pre_header
    _
  $region3: #{output_conv_pallas.1} parent=0 // loop_header
    %s9 = sphi 0, %s13
    %p10 = scmp.ge.s32.totalorder %s9, 4
    %s19 = sphi 0, %s21
    %s22 = sphi 0, %s19
    %s23 = sphi 0, %s22
    %s39 = sphi 0, %s23
    %s43 = sphi 0, %s43
    %s45 = sphi 0, %s43
    %s46 = sphi 0, %s45
    %s60 = sphi 0, %s46
    %s64 = sphi 0, %s64
    %s66 = sphi 0, %s64
    %s67 = sphi 0, %s66
    %s81 = sphi 0, %s67
    %s87 = sphi 0, %s89
    %s90 = sphi 0, %s87
    %s91 = sphi 0, %s90
    %s107 = sphi 0, %s91
  $region4: #{output_conv_pallas.1} parent=0 // loop_header_branch
    %12 = sbr.rel (%p10) target = $region8
  $region5: #{output_conv_pallas.1} parent=0 // loop_body
    %s14 = ssub.s32 %s9, 1
    %s15 = ssub.s32 %s9, 2
    %s16 = sadd.s32 %s9, 1
    %s17 = ssub.s32 %s9, %s16
    %p18 = scmp.eq.s32.totalorder %s17, 0
    %s20 = sadd.s32 %s19, 1
    %s21 = scalar_select %p18, %s19, %s20
    %p24 = pneg %p18
    %p25 = scmp.eq.s32.totalorder %s9, 1
    %p26 = por %p24, %p25
    %p27 = scmp.ne.s32.totalorder %s19, %s22
    %p28 = scmp.eq.s32.totalorder %s9, 0
    %p29 = por %p27, %p28
    %p30 = scmp.ne.s32.totalorder %s19, %s22
    %p31 = scmp.eq.s32.totalorder %s14, 1
    %p32 = por %p30, %p31
    %p33 = scmp.ne.s32.totalorder %s22, %s23
    %p34 = scmp.eq.s32.totalorder %s14, 0
    %p35 = por %p33, %p34
    %p36 = scmp.ne.s32.totalorder %s22, %s23
    %p37 = scmp.eq.s32.totalorder %s15, 1
    %p38 = por %p36, %p37
    %p40 = scmp.ne.s32.totalorder %s23, %s39
    %p41 = scmp.eq.s32.totalorder %s15, 0
    %p42 = por %p40, %p41
    %s44 = sadd.s32 %s43, 1
    %p47 = scmp.eq.s32.totalorder %s9, 1
    %p48 = scmp.ne.s32.totalorder %s43, %s45
    %p49 = scmp.eq.s32.totalorder %s9, 0
    %p50 = por %p48, %p49
    %p51 = scmp.ne.s32.totalorder %s43, %s45
    %p52 = scmp.eq.s32.totalorder %s14, 1
    %p53 = por %p51, %p52
    %p54 = scmp.ne.s32.totalorder %s45, %s46
    %p55 = scmp.eq.s32.totalorder %s14, 0
    %p56 = por %p54, %p55
    %p57 = scmp.ne.s32.totalorder %s45, %s46
    %p58 = scmp.eq.s32.totalorder %s15, 1
    %p59 = por %p57, %p58
    %p61 = scmp.ne.s32.totalorder %s46, %s60
    %p62 = scmp.eq.s32.totalorder %s15, 0
    %p63 = por %p61, %p62
    %s65 = sadd.s32 %s64, 1
    %p68 = scmp.eq.s32.totalorder %s9, 1
    %p69 = scmp.ne.s32.totalorder %s64, %s66
    %p70 = scmp.eq.s32.totalorder %s9, 0
    %p71 = por %p69, %p70
    %p72 = scmp.ne.s32.totalorder %s64, %s66
    %p73 = scmp.eq.s32.totalorder %s14, 1
    %p74 = por %p72, %p73
    %p75 = scmp.ne.s32.totalorder %s66, %s67
    %p76 = scmp.eq.s32.totalorder %s14, 0
    %p77 = por %p75, %p76
    %p78 = scmp.ne.s32.totalorder %s66, %s67
    %p79 = scmp.eq.s32.totalorder %s15, 1
    %p80 = por %p78, %p79
    %p82 = scmp.ne.s32.totalorder %s67, %s81
    %p83 = scmp.eq.s32.totalorder %s15, 0
    %p84 = por %p82, %p83
    %s85 = ssub.s32 %s9, %s16
    %p86 = scmp.eq.s32.totalorder %s85, 0
    %s88 = sadd.s32 %s87, 1
    %s89 = scalar_select %p86, %s87, %s88
    %p92 = pneg %p86
    %p93 = scmp.eq.s32.totalorder %s9, 1
    %p94 = por %p92, %p93
    %p95 = scmp.ne.s32.totalorder %s87, %s90
    %p96 = scmp.eq.s32.totalorder %s9, 0
    %p97 = por %p95, %p96
    %p98 = scmp.ne.s32.totalorder %s87, %s90
    %p99 = scmp.eq.s32.totalorder %s14, 1
    %p100 = por %p98, %p99
    %p101 = scmp.ne.s32.totalorder %s90, %s91
    %p102 = scmp.eq.s32.totalorder %s14, 0
    %p103 = por %p101, %p102
    %p104 = scmp.ne.s32.totalorder %s90, %s91
    %p105 = scmp.eq.s32.totalorder %s15, 1
    %p106 = por %p104, %p105
    %p108 = scmp.ne.s32.totalorder %s91, %s107
    %p109 = scmp.eq.s32.totalorder %s15, 0
    %p110 = por %p108, %p109
    %p111 = scmp.le.s32.totalorder 1, %s9
    %p112 = scmp.lt.s32.totalorder %s9, 3
    %p113 = pnand %p111, %p112
    %p114 = pneg %p113
    // Predicated region
    $region9: #{output_conv_pallas.1} parent=5 // pred_check
      _
    $region10: #{output_conv_pallas.1} parent=5 // pred_check_branch
      %116 = sbr.rel (%p113) target = $region12
    $region11: #{output_conv_pallas.1} parent=5 // pred_region
      %s117 = ssub.s32 %s9, 1
      // Predicated region
      $region13: #{output_conv_pallas.1} parent=11 // pred_check
        %p118 = pneg %p56
      $region14: #{output_conv_pallas.1} parent=11 // pred_check_branch
        %120 = sbr.rel (%p118) target = $region16
      $region15: #{output_conv_pallas.1} parent=11 // pred_region
        _
      $region16: #{output_conv_pallas.1} parent=11 // pred_fallthru
        _
      // Predicated region
      $region17: #{output_conv_pallas.1} parent=11 // pred_check
        %p121 = pneg %p77
      $region18: #{output_conv_pallas.1} parent=11 // pred_check_branch
        %123 = sbr.rel (%p121) target = $region20
      $region19: #{output_conv_pallas.1} parent=11 // pred_region
        _
      $region20: #{output_conv_pallas.1} parent=11 // pred_fallthru
        _
    $region12: #{output_conv_pallas.1} parent=5 // pred_fallthru
      _
    %p124 = scmp.lt.s32.totalorder %s9, 2
    // Predicated region
    $region21: #{output_conv_pallas.1} parent=5 // pred_check
      %p125 = pneg %p124
    $region22: #{output_conv_pallas.1} parent=5 // pred_check_branch
      %127 = sbr.rel (%p125) target = $region24
    $region23: #{output_conv_pallas.1} parent=5 // pred_region
      // Predicated region
      $region25: #{output_conv_pallas.1} parent=23 // pred_check
        %p128 = pneg %p29
      $region26: #{output_conv_pallas.1} parent=23 // pred_check_branch
        %130 = sbr.rel (%p128) target = $region28
      $region27: #{output_conv_pallas.1} parent=23 // pred_region
        %p131 = scmp.lt.s32.totalorder %s9, 1
        %s132 = scalar_select %p131, %s9, 1
        %s133 = smul.addr %s132, 54
        %s134 = smul.addr %s133, 4
        %s135 = scalar_lea.vmem %s0, %s134
      $region28: #{output_conv_pallas.1} parent=23 // pred_fallthru
        _
    $region24: #{output_conv_pallas.1} parent=5 // pred_fallthru
      _
    %p136 = scmp.le.s32.totalorder 1, %s9
    %p137 = scmp.lt.s32.totalorder %s9, 3
    %p138 = pnand %p136, %p137
    %p139 = pneg %p138
    // Predicated region
    $region29: #{output_conv_pallas.1} parent=5 // pred_check
      _
    $region30: #{output_conv_pallas.1} parent=5 // pred_check_branch
      %141 = sbr.rel (%p138) target = $region32
    $region31: #{output_conv_pallas.1} parent=5 // pred_region
      %s142 = ssub.s32 %s9, 1
      %p143 = scmp.lt.s32.totalorder %s14, 1
      %s144 = scalar_select %p143, %s14, 1
      %s145 = smul.addr %s144, 54
      %s146 = smul.addr %s145, 4
      %s147 = scalar_lea.vmem %s0, %s146
      %p148 = pneg %p35
      %p149 = pneg %p32
      %p150 = pneg %p56
      %p151 = pneg %p53
      %p152 = pneg %p77
      %p153 = pneg %p74
      %p154 = pneg %p103
      %p155 = pneg %p100
      %p156 = scmp.lt.s32.totalorder %s14, 1
      %s157 = scalar_select %p156, %s14, 1
      %s158 = smul.addr %s157, 32
      %s159 = smul.addr %s158, 8
      %s160 = scalar_lea.vmem %s3, %s159
      %p161 = scmp.lt.s32.totalorder %s14, 1
      %s162 = scalar_select %p161, %s14, 1
      %s163 = smul.addr %s162, 54
      %s164 = smul.addr %s163, 4
      %s165 = scalar_lea.vmem %s0, %s164
      %p166 = scmp.lt.s32.totalorder %s14, 1
      %s167 = scalar_select %p166, %s14, 1
      %s168 = smul.addr %s167, 32
      %s169 = smul.addr %s168, 8
      %s170 = scalar_lea.vmem %s3, %s169
      %v172 = vld [vmem:[%s165] sm:$0xf]
      %v173 = vld [vmem:[%s165 + $0x4] sm:$0xf]
      %v174 = vld [vmem:[%s165 + $0x8] sm:$0x1]
      %v175 = vld [vmem:[%s165 + $0xc] sm:$0xf]
      %v176 = vld [vmem:[%s165 + $0x10] sm:$0xf]
      %v177 = vld [vmem:[%s165 + $0x14] sm:$0x1]
      %v178 = vld [vmem:[%s165 + $0x18] sm:$0xf]
      %v179 = vld [vmem:[%s165 + $0x1c] sm:$0xf]
      %v180 = vld [vmem:[%s165 + $0x20] sm:$0x1]
      %v181 = vld [vmem:[%s165 + $0x24] sm:$0xf]
      %v182 = vld [vmem:[%s165 + $0x28] sm:$0xf]
      %v183 = vld [vmem:[%s165 + $0x2c] sm:$0x1]
      %v184 = vld [vmem:[%s165 + $0x30] sm:$0xf]
      %v185 = vld [vmem:[%s165 + $0x34] sm:$0xf]
      %v186 = vld [vmem:[%s165 + $0x38] sm:$0x1]
      %v187 = vld [vmem:[%s165 + $0x3c] sm:$0xf]
      %v188 = vld [vmem:[%s165 + $0x40] sm:$0xf]
      %v189 = vld [vmem:[%s165 + $0x44] sm:$0x1]
      %v190 = vld [vmem:[%s165 + $0x48] sm:$0xf]
      %v191 = vld [vmem:[%s165 + $0x4c] sm:$0xf]
      %v192 = vld [vmem:[%s165 + $0x50] sm:$0x1]
      %v193 = vld [vmem:[%s165 + $0x54] sm:$0xf]
      %v194 = vld [vmem:[%s165 + $0x58] sm:$0xf]
      %v195 = vld [vmem:[%s165 + $0x5c] sm:$0x1]
      %v196 = vld [vmem:[%s165 + $0x60] sm:$0xf]
      %v197 = vld [vmem:[%s165 + $0x64] sm:$0xf]
      %v198 = vld [vmem:[%s165 + $0x68] sm:$0x1]
      %v199 = vld [vmem:[%s165 + $0x6c] sm:$0xf]
      %v200 = vld [vmem:[%s165 + $0x70] sm:$0xf]
      %v201 = vld [vmem:[%s165 + $0x74] sm:$0x1]
      %v202 = vld [vmem:[%s165 + $0x78] sm:$0xf]
      %v203 = vld [vmem:[%s165 + $0x7c] sm:$0xf]
      %v204 = vld [vmem:[%s165 + $0x80] sm:$0x1]
      %v205 = vld [vmem:[%s165 + $0x84] sm:$0xf]
      %v206 = vld [vmem:[%s165 + $0x88] sm:$0xf]
      %v207 = vld [vmem:[%s165 + $0x8c] sm:$0x1]
      %v208 = vld [vmem:[%s165 + $0x90] sm:$0xf]
      %v209 = vld [vmem:[%s165 + $0x94] sm:$0xf]
      %v210 = vld [vmem:[%s165 + $0x98] sm:$0x1]
      %v211 = vld [vmem:[%s165 + $0x9c] sm:$0xf]
      %v212 = vld [vmem:[%s165 + $0xa0] sm:$0xf]
      %v213 = vld [vmem:[%s165 + $0xa4] sm:$0x1]
      %v214 = vld [vmem:[%s165 + $0xa8] sm:$0xf]
      %v215 = vld [vmem:[%s165 + $0xac] sm:$0xf]
      %v216 = vld [vmem:[%s165 + $0xb0] sm:$0x1]
      %v217 = vld [vmem:[%s165 + $0xb4] sm:$0xf]
      %v218 = vld [vmem:[%s165 + $0xb8] sm:$0xf]
      %v219 = vld [vmem:[%s165 + $0xbc] sm:$0x1]
      %v220 = vld [vmem:[%s165 + $0xc0] sm:$0xf]
      %v221 = vld [vmem:[%s165 + $0xc4] sm:$0xf]
      %v222 = vld [vmem:[%s165 + $0xc8] sm:$0x1]
      %v223 = vld [vmem:[%s165 + $0xcc] sm:$0xf]
      %v224 = vld [vmem:[%s165 + $0xd0] sm:$0xf]
      %v225 = vld [vmem:[%s165 + $0xd4] sm:$0x1]
      %v226 = vld [vmem:[%s1] sm:$0x3]
      %vm227 = vsmask.f32 3328
      %vm228 = vsmask.f32 7440
      %vm229 = vmor %vm227, %vm228
      %v231 = vshrl.u32 %v172, 16
      %v233 = vrot.slane %v231, 4
      %v234 = vshll.u32 %v172, 16
      %v236 = vrot.slane %v234, 5
      %v237 = vor.u32 %v233, %v236
      %v238 = vrot.slane %v237, 4
      %v240 = vshll.u32 %v173, 16
      %v242 = vrot.slane %v240, 5
      %v243 = vsel %vm229, %v238, %v242
      %v244 = vshrl.u32 %v173, 16
      %v246 = vrot.slane %v244, 4
      %v247 = vor.u32 %v246, %v242
      %v248 = vrot.slane %v247, 4
      %v250 = vshll.u32 %v174, 16
      %v252 = vrot.slane %v250, 5
      %v253 = vsel %vm229, %v248, %v252
      %v255 = vshrl.u32 %v175, 16
      %v257 = vrot.slane %v255, 4
      %v258 = vshll.u32 %v175, 16
      %v260 = vrot.slane %v258, 5
      %v261 = vor.u32 %v257, %v260
      %v262 = vrot.slane %v261, 4
      %v264 = vshll.u32 %v176, 16
      %v266 = vrot.slane %v264, 5
      %v267 = vsel %vm229, %v262, %v266
      %v268 = vshrl.u32 %v176, 16
      %v270 = vrot.slane %v268, 4
      %v271 = vor.u32 %v270, %v266
      %v272 = vrot.slane %v271, 4
      %v274 = vshll.u32 %v177, 16
      %v276 = vrot.slane %v274, 5
      %v277 = vsel %vm229, %v272, %v276
      %v279 = vshrl.u32 %v178, 16
      %v281 = vrot.slane %v279, 4
      %v282 = vshll.u32 %v178, 16
      %v284 = vrot.slane %v282, 5
      %v285 = vor.u32 %v281, %v284
      %v286 = vrot.slane %v285, 4
      %v288 = vshll.u32 %v179, 16
      %v290 = vrot.slane %v288, 5
      %v291 = vsel %vm229, %v286, %v290
      %v292 = vshrl.u32 %v179, 16
      %v294 = vrot.slane %v292, 4
      %v295 = vor.u32 %v294, %v290
      %v296 = vrot.slane %v295, 4
      %v298 = vshll.u32 %v180, 16
      %v300 = vrot.slane %v298, 5
      %v301 = vsel %vm229, %v296, %v300
      %v303 = vshrl.u32 %v181, 16
      %v305 = vrot.slane %v303, 4
      %v306 = vshll.u32 %v181, 16
      %v308 = vrot.slane %v306, 5
      %v309 = vor.u32 %v305, %v308
      %v310 = vrot.slane %v309, 4
      %v312 = vshll.u32 %v182, 16
      %v314 = vrot.slane %v312, 5
      %v315 = vsel %vm229, %v310, %v314
      %v316 = vshrl.u32 %v182, 16
      %v318 = vrot.slane %v316, 4
      %v319 = vor.u32 %v318, %v314
      %v320 = vrot.slane %v319, 4
      %v322 = vshll.u32 %v183, 16
      %v324 = vrot.slane %v322, 5
      %v325 = vsel %vm229, %v320, %v324
      %v327 = vshrl.u32 %v184, 16
      %v329 = vrot.slane %v327, 4
      %v330 = vshll.u32 %v184, 16
      %v332 = vrot.slane %v330, 5
      %v333 = vor.u32 %v329, %v332
      %v334 = vrot.slane %v333, 4
      %v336 = vshll.u32 %v185, 16
      %v338 = vrot.slane %v336, 5
      %v339 = vsel %vm229, %v334, %v338
      %v340 = vshrl.u32 %v185, 16
      %v342 = vrot.slane %v340, 4
      %v343 = vor.u32 %v342, %v338
      %v344 = vrot.slane %v343, 4
      %v346 = vshll.u32 %v186, 16
      %v348 = vrot.slane %v346, 5
      %v349 = vsel %vm229, %v344, %v348
      %v351 = vshrl.u32 %v187, 16
      %v353 = vrot.slane %v351, 4
      %v354 = vshll.u32 %v187, 16
      %v356 = vrot.slane %v354, 5
      %v357 = vor.u32 %v353, %v356
      %v358 = vrot.slane %v357, 4
      %v360 = vshll.u32 %v188, 16
      %v362 = vrot.slane %v360, 5
      %v363 = vsel %vm229, %v358, %v362
      %v364 = vshrl.u32 %v188, 16
      %v366 = vrot.slane %v364, 4
      %v367 = vor.u32 %v366, %v362
      %v368 = vrot.slane %v367, 4
      %v370 = vshll.u32 %v189, 16
      %v372 = vrot.slane %v370, 5
      %v373 = vsel %vm229, %v368, %v372
      %v375 = vshrl.u32 %v190, 16
      %v377 = vrot.slane %v375, 4
      %v378 = vshll.u32 %v190, 16
      %v380 = vrot.slane %v378, 5
      %v381 = vor.u32 %v377, %v380
      %v382 = vrot.slane %v381, 4
      %v384 = vshll.u32 %v191, 16
      %v386 = vrot.slane %v384, 5
      %v387 = vsel %vm229, %v382, %v386
      %v388 = vshrl.u32 %v191, 16
      %v390 = vrot.slane %v388, 4
      %v391 = vor.u32 %v390, %v386
      %v392 = vrot.slane %v391, 4
      %v394 = vshll.u32 %v192, 16
      %v396 = vrot.slane %v394, 5
      %v397 = vsel %vm229, %v392, %v396
      %v399 = vshrl.u32 %v193, 16
      %v401 = vrot.slane %v399, 4
      %v402 = vshll.u32 %v193, 16
      %v404 = vrot.slane %v402, 5
      %v405 = vor.u32 %v401, %v404
      %v406 = vrot.slane %v405, 4
      %v408 = vshll.u32 %v194, 16
      %v410 = vrot.slane %v408, 5
      %v411 = vsel %vm229, %v406, %v410
      %v412 = vshrl.u32 %v194, 16
      %v414 = vrot.slane %v412, 4
      %v415 = vor.u32 %v414, %v410
      %v416 = vrot.slane %v415, 4
      %v418 = vshll.u32 %v195, 16
      %v420 = vrot.slane %v418, 5
      %v421 = vsel %vm229, %v416, %v420
      %v423 = vshrl.u32 %v196, 16
      %v425 = vrot.slane %v423, 4
      %v426 = vshll.u32 %v196, 16
      %v428 = vrot.slane %v426, 5
      %v429 = vor.u32 %v425, %v428
      %v430 = vrot.slane %v429, 4
      %v432 = vshll.u32 %v197, 16
      %v434 = vrot.slane %v432, 5
      %v435 = vsel %vm229, %v430, %v434
      %v436 = vshrl.u32 %v197, 16
      %v438 = vrot.slane %v436, 4
      %v439 = vor.u32 %v438, %v434
      %v440 = vrot.slane %v439, 4
      %v442 = vshll.u32 %v198, 16
      %v444 = vrot.slane %v442, 5
      %v445 = vsel %vm229, %v440, %v444
      %v447 = vshrl.u32 %v199, 16
      %v449 = vrot.slane %v447, 4
      %v450 = vshll.u32 %v199, 16
      %v452 = vrot.slane %v450, 5
      %v453 = vor.u32 %v449, %v452
      %v454 = vrot.slane %v453, 4
      %v456 = vshll.u32 %v200, 16
      %v458 = vrot.slane %v456, 5
      %v459 = vsel %vm229, %v454, %v458
      %v460 = vshrl.u32 %v200, 16
      %v462 = vrot.slane %v460, 4
      %v463 = vor.u32 %v462, %v458
      %v464 = vrot.slane %v463, 4
      %v466 = vshll.u32 %v201, 16
      %v468 = vrot.slane %v466, 5
      %v469 = vsel %vm229, %v464, %v468
      %v471 = vshrl.u32 %v202, 16
      %v473 = vrot.slane %v471, 4
      %v474 = vshll.u32 %v202, 16
      %v476 = vrot.slane %v474, 5
      %v477 = vor.u32 %v473, %v476
      %v478 = vrot.slane %v477, 4
      %v480 = vshll.u32 %v203, 16
      %v482 = vrot.slane %v480, 5
      %v483 = vsel %vm229, %v478, %v482
      %v484 = vshrl.u32 %v203, 16
      %v486 = vrot.slane %v484, 4
      %v487 = vor.u32 %v486, %v482
      %v488 = vrot.slane %v487, 4
      %v490 = vshll.u32 %v204, 16
      %v492 = vrot.slane %v490, 5
      %v493 = vsel %vm229, %v488, %v492
      %v495 = vshrl.u32 %v205, 16
      %v497 = vrot.slane %v495, 4
      %v498 = vshll.u32 %v205, 16
      %v500 = vrot.slane %v498, 5
      %v501 = vor.u32 %v497, %v500
      %v502 = vrot.slane %v501, 4
      %v504 = vshll.u32 %v206, 16
      %v506 = vrot.slane %v504, 5
      %v507 = vsel %vm229, %v502, %v506
      %v508 = vshrl.u32 %v206, 16
      %v510 = vrot.slane %v508, 4
      %v511 = vor.u32 %v510, %v506
      %v512 = vrot.slane %v511, 4
      %v514 = vshll.u32 %v207, 16
      %v516 = vrot.slane %v514, 5
      %v517 = vsel %vm229, %v512, %v516
      %v519 = vshrl.u32 %v208, 16
      %v521 = vrot.slane %v519, 4
      %v522 = vshll.u32 %v208, 16
      %v524 = vrot.slane %v522, 5
      %v525 = vor.u32 %v521, %v524
      %v526 = vrot.slane %v525, 4
      %v528 = vshll.u32 %v209, 16
      %v530 = vrot.slane %v528, 5
      %v531 = vsel %vm229, %v526, %v530
      %v532 = vshrl.u32 %v209, 16
      %v534 = vrot.slane %v532, 4
      %v535 = vor.u32 %v534, %v530
      %v536 = vrot.slane %v535, 4
      %v538 = vshll.u32 %v210, 16
      %v540 = vrot.slane %v538, 5
      %v541 = vsel %vm229, %v536, %v540
      %v543 = vshrl.u32 %v211, 16
      %v545 = vrot.slane %v543, 4
      %v546 = vshll.u32 %v211, 16
      %v548 = vrot.slane %v546, 5
      %v549 = vor.u32 %v545, %v548
      %v550 = vrot.slane %v549, 4
      %v552 = vshll.u32 %v212, 16
      %v554 = vrot.slane %v552, 5
      %v555 = vsel %vm229, %v550, %v554
      %v556 = vshrl.u32 %v212, 16
      %v558 = vrot.slane %v556, 4
      %v559 = vor.u32 %v558, %v554
      %v560 = vrot.slane %v559, 4
      %v562 = vshll.u32 %v213, 16
      %v564 = vrot.slane %v562, 5
      %v565 = vsel %vm229, %v560, %v564
      %v567 = vshrl.u32 %v214, 16
      %v569 = vrot.slane %v567, 4
      %v570 = vshll.u32 %v214, 16
      %v572 = vrot.slane %v570, 5
      %v573 = vor.u32 %v569, %v572
      %v574 = vrot.slane %v573, 4
      %v576 = vshll.u32 %v215, 16
      %v578 = vrot.slane %v576, 5
      %v579 = vsel %vm229, %v574, %v578
      %v580 = vshrl.u32 %v215, 16
      %v582 = vrot.slane %v580, 4
      %v583 = vor.u32 %v582, %v578
      %v584 = vrot.slane %v583, 4
      %v586 = vshll.u32 %v216, 16
      %v588 = vrot.slane %v586, 5
      %v589 = vsel %vm229, %v584, %v588
      %v591 = vshrl.u32 %v217, 16
      %v593 = vrot.slane %v591, 4
      %v594 = vshll.u32 %v217, 16
      %v596 = vrot.slane %v594, 5
      %v597 = vor.u32 %v593, %v596
      %v598 = vrot.slane %v597, 4
      %v600 = vshll.u32 %v218, 16
      %v602 = vrot.slane %v600, 5
      %v603 = vsel %vm229, %v598, %v602
      %v604 = vshrl.u32 %v218, 16
      %v606 = vrot.slane %v604, 4
      %v607 = vor.u32 %v606, %v602
      %v608 = vrot.slane %v607, 4
      %v610 = vshll.u32 %v219, 16
      %v612 = vrot.slane %v610, 5
      %v613 = vsel %vm229, %v608, %v612
      %v614 = vld [vmem:[%s1] sm:$0xc]
      %v615 = vunpack.c.l.b16 %v243
      %v616 = vunpack.c.l.b16 %v253
      %v617 = vunpack.c.l.b16 %v267
      %v618 = vunpack.c.l.b16 %v277
      %v619 = vunpack.c.l.b16 %v291
      %v620 = vunpack.c.l.b16 %v301
      %v621 = vunpack.c.l.b16 %v315
      %v622 = vunpack.c.l.b16 %v325
      %v623 = vunpack.c.l.b16 %v339
      %v624 = vunpack.c.l.b16 %v349
      %v625 = vunpack.c.l.b16 %v363
      %v626 = vunpack.c.l.b16 %v373
      %v627 = vunpack.c.l.b16 %v387
      %v628 = vunpack.c.l.b16 %v397
      %v629 = vunpack.c.l.b16 %v411
      %v630 = vunpack.c.l.b16 %v421
      %v631 = vunpack.c.l.b16 %v435
      %v632 = vunpack.c.l.b16 %v445
      %v633 = vunpack.c.l.b16 %v459
      %v634 = vunpack.c.l.b16 %v469
      %v635 = vunpack.c.l.b16 %v483
      %v636 = vunpack.c.l.b16 %v493
      %v637 = vunpack.c.l.b16 %v507
      %v638 = vunpack.c.l.b16 %v517
      %v639 = vunpack.c.l.b16 %v531
      %v640 = vunpack.c.l.b16 %v541
      %v641 = vunpack.c.l.b16 %v555
      %v642 = vunpack.c.l.b16 %v565
      %v643 = vunpack.c.l.b16 %v579
      %v644 = vunpack.c.l.b16 %v589
      %v645 = vunpack.c.l.b16 %v603
      %v646 = vunpack.c.l.b16 %v613
      %v647 = vpack.c.b16 %v616, %v615
      %v648 = vpack.c.b16 %v618, %v617
      %v649 = vpack.c.b16 %v620, %v619
      %v650 = vpack.c.b16 %v622, %v621
      %v651 = vpack.c.b16 %v624, %v623
      %v652 = vpack.c.b16 %v626, %v625
      %v653 = vpack.c.b16 %v628, %v627
      %v654 = vpack.c.b16 %v630, %v629
      %v655 = vpack.c.b16 %v632, %v631
      %v656 = vpack.c.b16 %v634, %v633
      %v657 = vpack.c.b16 %v636, %v635
      %v658 = vpack.c.b16 %v638, %v637
      %v659 = vpack.c.b16 %v640, %v639
      %v660 = vpack.c.b16 %v642, %v641
      %v661 = vpack.c.b16 %v644, %v643
      %v662 = vpack.c.b16 %v646, %v645
      %v664 = vunpack.c.l.b16 %v614
      %v665 = vpack.c.b16 %v664, %v664
      %v666 = vrot.slane %v665, 2
      %vm667 = vcmask 31744
      %v669 = vsel %vm667, %v647, 0
      %v672 = vsel %vm667, %v648, 0
      %v675 = vsel %vm667, %v649, 0
      %v678 = vsel %vm667, %v650, 0
      %v681 = vsel %vm667, %v651, 0
      %v684 = vsel %vm667, %v652, 0
      %v687 = vsel %vm667, %v653, 0
      %v690 = vsel %vm667, %v654, 0
      %v693 = vsel %vm667, %v655, 0
      %v696 = vsel %vm667, %v656, 0
      %v699 = vsel %vm667, %v657, 0
      %v702 = vsel %vm667, %v658, 0
      %v705 = vsel %vm667, %v659, 0
      %v708 = vsel %vm667, %v660, 0
      %v711 = vsel %vm667, %v661, 0
      %v714 = vsel %vm667, %v662, 0
      %vm716 = vcmask 1041408
      %v718 = vsel %vm716, %v666, 0
      %720 = vmatpush.bf16.msra.mxu0 0
      %721 = vmatpush.bf16.msra.mxu0 0
      %722 = vmatpush.bf16.msra.mxu0 0
      %723 = vmatpush.bf16.msra.mxu0 0
      %724 = vmatpush.bf16.msra.mxu0 0
      %725 = vmatpush.bf16.msra.mxu0 0
      %726 = vmatpush.bf16.msra.mxu0 0
      %727 = vmatpush.bf16.msra.mxu0 %v718
      %728 = vmatmul.bf16.gmra.mxu0 %v669
      %v729 = vpop.f32.mrf.mxu0
      %v730 = vadd.f32 0.0, %v729
      %v731 = vpop.f32.mrf.mxu0
      %v732 = vadd.f32 0.0, %v731
      %733 = vmatmul.bf16.gmra.mxu0 %v672
      %v734 = vpop.f32.mrf.mxu0
      %v735 = vadd.f32 0.0, %v734
      %v736 = vpop.f32.mrf.mxu0
      %v737 = vadd.f32 0.0, %v736
      %738 = vmatmul.bf16.gmra.mxu0 %v675
      %v739 = vpop.f32.mrf.mxu0
      %v740 = vadd.f32 0.0, %v739
      %v741 = vpop.f32.mrf.mxu0
      %v742 = vadd.f32 0.0, %v741
      %743 = vmatmul.bf16.gmra.mxu0 %v678
      %v744 = vpop.f32.mrf.mxu0
      %v745 = vadd.f32 0.0, %v744
      %v746 = vpop.f32.mrf.mxu0
      %v747 = vadd.f32 0.0, %v746
      %748 = vmatmul.bf16.gmra.mxu0 %v681
      %v749 = vpop.f32.mrf.mxu0
      %v750 = vadd.f32 0.0, %v749
      %v751 = vpop.f32.mrf.mxu0
      %v752 = vadd.f32 0.0, %v751
      %753 = vmatmul.bf16.gmra.mxu0 %v684
      %v754 = vpop.f32.mrf.mxu0
      %v755 = vadd.f32 0.0, %v754
      %v756 = vpop.f32.mrf.mxu0
      %v757 = vadd.f32 0.0, %v756
      %758 = vmatmul.bf16.gmra.mxu0 %v687
      %v759 = vpop.f32.mrf.mxu0
      %v760 = vadd.f32 0.0, %v759
      %v761 = vpop.f32.mrf.mxu0
      %v762 = vadd.f32 0.0, %v761
      %763 = vmatmul.bf16.gmra.mxu0 %v690
      %v764 = vpop.f32.mrf.mxu0
      %v765 = vadd.f32 0.0, %v764
      %v766 = vpop.f32.mrf.mxu0
      %v767 = vadd.f32 0.0, %v766
      %768 = vmatmul.bf16.gmra.mxu0 %v693
      %v769 = vpop.f32.mrf.mxu0
      %v770 = vadd.f32 0.0, %v769
      %v771 = vpop.f32.mrf.mxu0
      %v772 = vadd.f32 0.0, %v771
      %773 = vmatmul.bf16.gmra.mxu0 %v696
      %v774 = vpop.f32.mrf.mxu0
      %v775 = vadd.f32 0.0, %v774
      %v776 = vpop.f32.mrf.mxu0
      %v777 = vadd.f32 0.0, %v776
      %778 = vmatmul.bf16.gmra.mxu0 %v699
      %v779 = vpop.f32.mrf.mxu0
      %v780 = vadd.f32 0.0, %v779
      %v781 = vpop.f32.mrf.mxu0
      %v782 = vadd.f32 0.0, %v781
      %783 = vmatmul.bf16.gmra.mxu0 %v702
      %v784 = vpop.f32.mrf.mxu0
      %v785 = vadd.f32 0.0, %v784
      %v786 = vpop.f32.mrf.mxu0
      %v787 = vadd.f32 0.0, %v786
      %788 = vmatmul.bf16.gmra.mxu0 %v705
      %v789 = vpop.f32.mrf.mxu0
      %v790 = vadd.f32 0.0, %v789
      %v791 = vpop.f32.mrf.mxu0
      %v792 = vadd.f32 0.0, %v791
      %793 = vmatmul.bf16.gmra.mxu0 %v708
      %v794 = vpop.f32.mrf.mxu0
      %v795 = vadd.f32 0.0, %v794
      %v796 = vpop.f32.mrf.mxu0
      %v797 = vadd.f32 0.0, %v796
      %798 = vmatmul.bf16.gmra.mxu0 %v711
      %v799 = vpop.f32.mrf.mxu0
      %v800 = vadd.f32 0.0, %v799
      %v801 = vpop.f32.mrf.mxu0
      %v802 = vadd.f32 0.0, %v801
      %803 = vmatmul.bf16.gmra.mxu0 %v714
      %v804 = vpop.f32.mrf.mxu0
      %v805 = vadd.f32 0.0, %v804
      %v806 = vpop.f32.mrf.mxu0
      %v807 = vadd.f32 0.0, %v806
      %808 = vdwg.mxu0
      %v841 = vunpack.c.l.b16 %v172
      %v842 = vunpack.c.l.b16 %v173
      %v843 = vunpack.c.l.b16 %v175
      %v844 = vunpack.c.l.b16 %v176
      %v845 = vunpack.c.l.b16 %v178
      %v846 = vunpack.c.l.b16 %v179
      %v847 = vunpack.c.l.b16 %v181
      %v848 = vunpack.c.l.b16 %v182
      %v849 = vunpack.c.l.b16 %v184
      %v850 = vunpack.c.l.b16 %v185
      %v851 = vunpack.c.l.b16 %v187
      %v852 = vunpack.c.l.b16 %v188
      %v853 = vunpack.c.l.b16 %v190
      %v854 = vunpack.c.l.b16 %v191
      %v855 = vunpack.c.l.b16 %v193
      %v856 = vunpack.c.l.b16 %v194
      %v857 = vunpack.c.l.b16 %v196
      %v858 = vunpack.c.l.b16 %v197
      %v859 = vunpack.c.l.b16 %v199
      %v860 = vunpack.c.l.b16 %v200
      %v861 = vunpack.c.l.b16 %v202
      %v862 = vunpack.c.l.b16 %v203
      %v863 = vunpack.c.l.b16 %v205
      %v864 = vunpack.c.l.b16 %v206
      %v865 = vunpack.c.l.b16 %v208
      %v866 = vunpack.c.l.b16 %v209
      %v867 = vunpack.c.l.b16 %v211
      %v868 = vunpack.c.l.b16 %v212
      %v869 = vunpack.c.l.b16 %v214
      %v870 = vunpack.c.l.b16 %v215
      %v871 = vunpack.c.l.b16 %v217
      %v872 = vunpack.c.l.b16 %v218
      %v873 = vpack.c.b16 %v842, %v841
      %v874 = vpack.c.b16 %v844, %v843
      %v875 = vpack.c.b16 %v846, %v845
      %v876 = vpack.c.b16 %v848, %v847
      %v877 = vpack.c.b16 %v850, %v849
      %v878 = vpack.c.b16 %v852, %v851
      %v879 = vpack.c.b16 %v854, %v853
      %v880 = vpack.c.b16 %v856, %v855
      %v881 = vpack.c.b16 %v858, %v857
      %v882 = vpack.c.b16 %v860, %v859
      %v883 = vpack.c.b16 %v862, %v861
      %v884 = vpack.c.b16 %v864, %v863
      %v885 = vpack.c.b16 %v866, %v865
      %v886 = vpack.c.b16 %v868, %v867
      %v887 = vpack.c.b16 %v870, %v869
      %v888 = vpack.c.b16 %v872, %v871
      %v890 = vsel %vm667, %v873, 0
      %v893 = vsel %vm667, %v874, 0
      %v896 = vsel %vm667, %v875, 0
      %v899 = vsel %vm667, %v876, 0
      %v902 = vsel %vm667, %v877, 0
      %v905 = vsel %vm667, %v878, 0
      %v908 = vsel %vm667, %v879, 0
      %v911 = vsel %vm667, %v880, 0
      %v914 = vsel %vm667, %v881, 0
      %v917 = vsel %vm667, %v882, 0
      %v920 = vsel %vm667, %v883, 0
      %v923 = vsel %vm667, %v884, 0
      %v926 = vsel %vm667, %v885, 0
      %v929 = vsel %vm667, %v886, 0
      %v932 = vsel %vm667, %v887, 0
      %v935 = vsel %vm667, %v888, 0
      %v938 = vsel %vm716, %v226, 0
      %940 = vmatpush.bf16.msra.mxu0 0
      %941 = vmatpush.bf16.msra.mxu0 0
      %942 = vmatpush.bf16.msra.mxu0 0
      %943 = vmatpush.bf16.msra.mxu0 0
      %944 = vmatpush.bf16.msra.mxu0 0
      %945 = vmatpush.bf16.msra.mxu0 0
      %946 = vmatpush.bf16.msra.mxu0 0
      %947 = vmatpush.bf16.msra.mxu0 %v938
      %948 = vmatmul.bf16.gmra.mxu0 %v890
      %v949 = vpop.f32.mrf.mxu0
      %v950 = vadd.f32 %v730, %v949
      %v951 = vpop.f32.mrf.mxu0
      %v952 = vadd.f32 %v732, %v951
      %953 = vmatmul.bf16.gmra.mxu0 %v893
      %v954 = vpop.f32.mrf.mxu0
      %v955 = vadd.f32 %v735, %v954
      %v956 = vpop.f32.mrf.mxu0
      %v957 = vadd.f32 %v737, %v956
      %958 = vmatmul.bf16.gmra.mxu0 %v896
      %v959 = vpop.f32.mrf.mxu0
      %v960 = vadd.f32 %v740, %v959
      %v961 = vpop.f32.mrf.mxu0
      %v962 = vadd.f32 %v742, %v961
      %963 = vmatmul.bf16.gmra.mxu0 %v899
      %v964 = vpop.f32.mrf.mxu0
      %v965 = vadd.f32 %v745, %v964
      %v966 = vpop.f32.mrf.mxu0
      %v967 = vadd.f32 %v747, %v966
      %968 = vmatmul.bf16.gmra.mxu0 %v902
      %v969 = vpop.f32.mrf.mxu0
      %v970 = vadd.f32 %v750, %v969
      %v971 = vpop.f32.mrf.mxu0
      %v972 = vadd.f32 %v752, %v971
      %973 = vmatmul.bf16.gmra.mxu0 %v905
      %v974 = vpop.f32.mrf.mxu0
      %v975 = vadd.f32 %v755, %v974
      %v976 = vpop.f32.mrf.mxu0
      %v977 = vadd.f32 %v757, %v976
      %978 = vmatmul.bf16.gmra.mxu0 %v908
      %v979 = vpop.f32.mrf.mxu0
      %v980 = vadd.f32 %v760, %v979
      %v981 = vpop.f32.mrf.mxu0
      %v982 = vadd.f32 %v762, %v981
      %983 = vmatmul.bf16.gmra.mxu0 %v911
      %v984 = vpop.f32.mrf.mxu0
      %v985 = vadd.f32 %v765, %v984
      %v986 = vpop.f32.mrf.mxu0
      %v987 = vadd.f32 %v767, %v986
      %988 = vmatmul.bf16.gmra.mxu0 %v914
      %v989 = vpop.f32.mrf.mxu0
      %v990 = vadd.f32 %v770, %v989
      %v991 = vpop.f32.mrf.mxu0
      %v992 = vadd.f32 %v772, %v991
      %993 = vmatmul.bf16.gmra.mxu0 %v917
      %v994 = vpop.f32.mrf.mxu0
      %v995 = vadd.f32 %v775, %v994
      %v996 = vpop.f32.mrf.mxu0
      %v997 = vadd.f32 %v777, %v996
      %998 = vmatmul.bf16.gmra.mxu0 %v920
      %v999 = vpop.f32.mrf.mxu0
      %v1000 = vadd.f32 %v780, %v999
      %v1001 = vpop.f32.mrf.mxu0
      %v1002 = vadd.f32 %v782, %v1001
      %1003 = vmatmul.bf16.gmra.mxu0 %v923
      %v1004 = vpop.f32.mrf.mxu0
      %v1005 = vadd.f32 %v785, %v1004
      %v1006 = vpop.f32.mrf.mxu0
      %v1007 = vadd.f32 %v787, %v1006
      %1008 = vmatmul.bf16.gmra.mxu0 %v926
      %v1009 = vpop.f32.mrf.mxu0
      %v1010 = vadd.f32 %v790, %v1009
      %v1011 = vpop.f32.mrf.mxu0
      %v1012 = vadd.f32 %v792, %v1011
      %1013 = vmatmul.bf16.gmra.mxu0 %v929
      %v1014 = vpop.f32.mrf.mxu0
      %v1015 = vadd.f32 %v795, %v1014
      %v1016 = vpop.f32.mrf.mxu0
      %v1017 = vadd.f32 %v797, %v1016
      %1018 = vmatmul.bf16.gmra.mxu0 %v932
      %v1019 = vpop.f32.mrf.mxu0
      %v1020 = vadd.f32 %v800, %v1019
      %v1021 = vpop.f32.mrf.mxu0
      %v1022 = vadd.f32 %v802, %v1021
      %1023 = vmatmul.bf16.gmra.mxu0 %v935
      %v1024 = vpop.f32.mrf.mxu0
      %v1025 = vadd.f32 %v805, %v1024
      %v1026 = vpop.f32.mrf.mxu0
      %v1027 = vadd.f32 %v807, %v1026
      %1028 = vdwg.mxu0
      %vm1045 = vcmask 1042432
      %vm1046 = vcmask 1046532
      %vm1047 = vmor %vm1045, %vm1046
      %v1048 = vrot.slane %v172, 5
      %v1049 = vrot.slane %v1048, 4
      %v1050 = vrot.slane %v173, 5
      %v1051 = vsel %vm1047, %v1049, %v1050
      %v1052 = vrot.slane %v1050, 4
      %v1053 = vrot.slane %v174, 5
      %v1054 = vsel %vm1047, %v1052, %v1053
      %v1055 = vrot.slane %v175, 5
      %v1056 = vrot.slane %v1055, 4
      %v1057 = vrot.slane %v176, 5
      %v1058 = vsel %vm1047, %v1056, %v1057
      %v1059 = vrot.slane %v1057, 4
      %v1060 = vrot.slane %v177, 5
      %v1061 = vsel %vm1047, %v1059, %v1060
      %v1062 = vrot.slane %v178, 5
      %v1063 = vrot.slane %v1062, 4
      %v1064 = vrot.slane %v179, 5
      %v1065 = vsel %vm1047, %v1063, %v1064
      %v1066 = vrot.slane %v1064, 4
      %v1067 = vrot.slane %v180, 5
      %v1068 = vsel %vm1047, %v1066, %v1067
      %v1069 = vrot.slane %v181, 5
      %v1070 = vrot.slane %v1069, 4
      %v1071 = vrot.slane %v182, 5
      %v1072 = vsel %vm1047, %v1070, %v1071
      %v1073 = vrot.slane %v1071, 4
      %v1074 = vrot.slane %v183, 5
      %v1075 = vsel %vm1047, %v1073, %v1074
      %v1076 = vrot.slane %v184, 5
      %v1077 = vrot.slane %v1076, 4
      %v1078 = vrot.slane %v185, 5
      %v1079 = vsel %vm1047, %v1077, %v1078
      %v1080 = vrot.slane %v1078, 4
      %v1081 = vrot.slane %v186, 5
      %v1082 = vsel %vm1047, %v1080, %v1081
      %v1083 = vrot.slane %v187, 5
      %v1084 = vrot.slane %v1083, 4
      %v1085 = vrot.slane %v188, 5
      %v1086 = vsel %vm1047, %v1084, %v1085
      %v1087 = vrot.slane %v1085, 4
      %v1088 = vrot.slane %v189, 5
      %v1089 = vsel %vm1047, %v1087, %v1088
      %v1090 = vrot.slane %v190, 5
      %v1091 = vrot.slane %v1090, 4
      %v1092 = vrot.slane %v191, 5
      %v1093 = vsel %vm1047, %v1091, %v1092
      %v1094 = vrot.slane %v1092, 4
      %v1095 = vrot.slane %v192, 5
      %v1096 = vsel %vm1047, %v1094, %v1095
      %v1097 = vrot.slane %v193, 5
      %v1098 = vrot.slane %v1097, 4
      %v1099 = vrot.slane %v194, 5
      %v1100 = vsel %vm1047, %v1098, %v1099
      %v1101 = vrot.slane %v1099, 4
      %v1102 = vrot.slane %v195, 5
      %v1103 = vsel %vm1047, %v1101, %v1102
      %v1104 = vrot.slane %v196, 5
      %v1105 = vrot.slane %v1104, 4
      %v1106 = vrot.slane %v197, 5
      %v1107 = vsel %vm1047, %v1105, %v1106
      %v1108 = vrot.slane %v1106, 4
      %v1109 = vrot.slane %v198, 5
      %v1110 = vsel %vm1047, %v1108, %v1109
      %v1111 = vrot.slane %v199, 5
      %v1112 = vrot.slane %v1111, 4
      %v1113 = vrot.slane %v200, 5
      %v1114 = vsel %vm1047, %v1112, %v1113
      %v1115 = vrot.slane %v1113, 4
      %v1116 = vrot.slane %v201, 5
      %v1117 = vsel %vm1047, %v1115, %v1116
      %v1118 = vrot.slane %v202, 5
      %v1119 = vrot.slane %v1118, 4
      %v1120 = vrot.slane %v203, 5
      %v1121 = vsel %vm1047, %v1119, %v1120
      %v1122 = vrot.slane %v1120, 4
      %v1123 = vrot.slane %v204, 5
      %v1124 = vsel %vm1047, %v1122, %v1123
      %v1125 = vrot.slane %v205, 5
      %v1126 = vrot.slane %v1125, 4
      %v1127 = vrot.slane %v206, 5
      %v1128 = vsel %vm1047, %v1126, %v1127
      %v1129 = vrot.slane %v1127, 4
      %v1130 = vrot.slane %v207, 5
      %v1131 = vsel %vm1047, %v1129, %v1130
      %v1132 = vrot.slane %v208, 5
      %v1133 = vrot.slane %v1132, 4
      %v1134 = vrot.slane %v209, 5
      %v1135 = vsel %vm1047, %v1133, %v1134
      %v1136 = vrot.slane %v1134, 4
      %v1137 = vrot.slane %v210, 5
      %v1138 = vsel %vm1047, %v1136, %v1137
      %v1139 = vrot.slane %v211, 5
      %v1140 = vrot.slane %v1139, 4
      %v1141 = vrot.slane %v212, 5
      %v1142 = vsel %vm1047, %v1140, %v1141
      %v1143 = vrot.slane %v1141, 4
      %v1144 = vrot.slane %v213, 5
      %v1145 = vsel %vm1047, %v1143, %v1144
      %v1146 = vrot.slane %v214, 5
      %v1147 = vrot.slane %v1146, 4
      %v1148 = vrot.slane %v215, 5
      %v1149 = vsel %vm1047, %v1147, %v1148
      %v1150 = vrot.slane %v1148, 4
      %v1151 = vrot.slane %v216, 5
      %v1152 = vsel %vm1047, %v1150, %v1151
      %v1153 = vrot.slane %v217, 5
      %v1154 = vrot.slane %v1153, 4
      %v1155 = vrot.slane %v218, 5
      %v1156 = vsel %vm1047, %v1154, %v1155
      %v1157 = vrot.slane %v1155, 4
      %v1158 = vrot.slane %v219, 5
      %v1159 = vsel %vm1047, %v1157, %v1158
      %v1160 = vld [vmem:[%s1 + $0x4] sm:$0x3]
      %v1161 = vunpack.c.l.b16 %v1051
      %v1162 = vunpack.c.l.b16 %v1054
      %v1163 = vunpack.c.l.b16 %v1058
      %v1164 = vunpack.c.l.b16 %v1061
      %v1165 = vunpack.c.l.b16 %v1065
      %v1166 = vunpack.c.l.b16 %v1068
      %v1167 = vunpack.c.l.b16 %v1072
      %v1168 = vunpack.c.l.b16 %v1075
      %v1169 = vunpack.c.l.b16 %v1079
      %v1170 = vunpack.c.l.b16 %v1082
      %v1171 = vunpack.c.l.b16 %v1086
      %v1172 = vunpack.c.l.b16 %v1089
      %v1173 = vunpack.c.l.b16 %v1093
      %v1174 = vunpack.c.l.b16 %v1096
      %v1175 = vunpack.c.l.b16 %v1100
      %v1176 = vunpack.c.l.b16 %v1103
      %v1177 = vunpack.c.l.b16 %v1107
      %v1178 = vunpack.c.l.b16 %v1110
      %v1179 = vunpack.c.l.b16 %v1114
      %v1180 = vunpack.c.l.b16 %v1117
      %v1181 = vunpack.c.l.b16 %v1121
      %v1182 = vunpack.c.l.b16 %v1124
      %v1183 = vunpack.c.l.b16 %v1128
      %v1184 = vunpack.c.l.b16 %v1131
      %v1185 = vunpack.c.l.b16 %v1135
      %v1186 = vunpack.c.l.b16 %v1138
      %v1187 = vunpack.c.l.b16 %v1142
      %v1188 = vunpack.c.l.b16 %v1145
      %v1189 = vunpack.c.l.b16 %v1149
      %v1190 = vunpack.c.l.b16 %v1152
      %v1191 = vunpack.c.l.b16 %v1156
      %v1192 = vunpack.c.l.b16 %v1159
      %v1193 = vpack.c.b16 %v1162, %v1161
      %v1194 = vpack.c.b16 %v1164, %v1163
      %v1195 = vpack.c.b16 %v1166, %v1165
      %v1196 = vpack.c.b16 %v1168, %v1167
      %v1197 = vpack.c.b16 %v1170, %v1169
      %v1198 = vpack.c.b16 %v1172, %v1171
      %v1199 = vpack.c.b16 %v1174, %v1173
      %v1200 = vpack.c.b16 %v1176, %v1175
      %v1201 = vpack.c.b16 %v1178, %v1177
      %v1202 = vpack.c.b16 %v1180, %v1179
      %v1203 = vpack.c.b16 %v1182, %v1181
      %v1204 = vpack.c.b16 %v1184, %v1183
      %v1205 = vpack.c.b16 %v1186, %v1185
      %v1206 = vpack.c.b16 %v1188, %v1187
      %v1207 = vpack.c.b16 %v1190, %v1189
      %v1208 = vpack.c.b16 %v1192, %v1191
      %v1210 = vsel %vm667, %v1193, 0
      %v1213 = vsel %vm667, %v1194, 0
      %v1216 = vsel %vm667, %v1195, 0
      %v1219 = vsel %vm667, %v1196, 0
      %v1222 = vsel %vm667, %v1197, 0
      %v1225 = vsel %vm667, %v1198, 0
      %v1228 = vsel %vm667, %v1199, 0
      %v1231 = vsel %vm667, %v1200, 0
      %v1234 = vsel %vm667, %v1201, 0
      %v1237 = vsel %vm667, %v1202, 0
      %v1240 = vsel %vm667, %v1203, 0
      %v1243 = vsel %vm667, %v1204, 0
      %v1246 = vsel %vm667, %v1205, 0
      %v1249 = vsel %vm667, %v1206, 0
      %v1252 = vsel %vm667, %v1207, 0
      %v1255 = vsel %vm667, %v1208, 0
      %v1258 = vsel %vm716, %v1160, 0
      %1260 = vmatpush.bf16.msra.mxu0 0
      %1261 = vmatpush.bf16.msra.mxu0 0
      %1262 = vmatpush.bf16.msra.mxu0 0
      %1263 = vmatpush.bf16.msra.mxu0 0
      %1264 = vmatpush.bf16.msra.mxu0 0
      %1265 = vmatpush.bf16.msra.mxu0 0
      %1266 = vmatpush.bf16.msra.mxu0 0
      %1267 = vmatpush.bf16.msra.mxu0 %v1258
      %1268 = vmatmul.bf16.gmra.mxu0 %v1210
      %v1269 = vpop.f32.mrf.mxu0
      %v1270 = vadd.f32 0.0, %v1269
      %v1271 = vpop.f32.mrf.mxu0
      %v1272 = vadd.f32 0.0, %v1271
      %1273 = vmatmul.bf16.gmra.mxu0 %v1213
      %v1274 = vpop.f32.mrf.mxu0
      %v1275 = vadd.f32 0.0, %v1274
      %v1276 = vpop.f32.mrf.mxu0
      %v1277 = vadd.f32 0.0, %v1276
      %1278 = vmatmul.bf16.gmra.mxu0 %v1216
      %v1279 = vpop.f32.mrf.mxu0
      %v1280 = vadd.f32 0.0, %v1279
      %v1281 = vpop.f32.mrf.mxu0
      %v1282 = vadd.f32 0.0, %v1281
      %1283 = vmatmul.bf16.gmra.mxu0 %v1219
      %v1284 = vpop.f32.mrf.mxu0
      %v1285 = vadd.f32 0.0, %v1284
      %v1286 = vpop.f32.mrf.mxu0
      %v1287 = vadd.f32 0.0, %v1286
      %1288 = vmatmul.bf16.gmra.mxu0 %v1222
      %v1289 = vpop.f32.mrf.mxu0
      %v1290 = vadd.f32 0.0, %v1289
      %v1291 = vpop.f32.mrf.mxu0
      %v1292 = vadd.f32 0.0, %v1291
      %1293 = vmatmul.bf16.gmra.mxu0 %v1225
      %v1294 = vpop.f32.mrf.mxu0
      %v1295 = vadd.f32 0.0, %v1294
      %v1296 = vpop.f32.mrf.mxu0
      %v1297 = vadd.f32 0.0, %v1296
      %1298 = vmatmul.bf16.gmra.mxu0 %v1228
      %v1299 = vpop.f32.mrf.mxu0
      %v1300 = vadd.f32 0.0, %v1299
      %v1301 = vpop.f32.mrf.mxu0
      %v1302 = vadd.f32 0.0, %v1301
      %1303 = vmatmul.bf16.gmra.mxu0 %v1231
      %v1304 = vpop.f32.mrf.mxu0
      %v1305 = vadd.f32 0.0, %v1304
      %v1306 = vpop.f32.mrf.mxu0
      %v1307 = vadd.f32 0.0, %v1306
      %1308 = vmatmul.bf16.gmra.mxu0 %v1234
      %v1309 = vpop.f32.mrf.mxu0
      %v1310 = vadd.f32 0.0, %v1309
      %v1311 = vpop.f32.mrf.mxu0
      %v1312 = vadd.f32 0.0, %v1311
      %1313 = vmatmul.bf16.gmra.mxu0 %v1237
      %v1314 = vpop.f32.mrf.mxu0
      %v1315 = vadd.f32 0.0, %v1314
      %v1316 = vpop.f32.mrf.mxu0
      %v1317 = vadd.f32 0.0, %v1316
      %1318 = vmatmul.bf16.gmra.mxu0 %v1240
      %v1319 = vpop.f32.mrf.mxu0
      %v1320 = vadd.f32 0.0, %v1319
      %v1321 = vpop.f32.mrf.mxu0
      %v1322 = vadd.f32 0.0, %v1321
      %1323 = vmatmul.bf16.gmra.mxu0 %v1243
      %v1324 = vpop.f32.mrf.mxu0
      %v1325 = vadd.f32 0.0, %v1324
      %v1326 = vpop.f32.mrf.mxu0
      %v1327 = vadd.f32 0.0, %v1326
      %1328 = vmatmul.bf16.gmra.mxu0 %v1246
      %v1329 = vpop.f32.mrf.mxu0
      %v1330 = vadd.f32 0.0, %v1329
      %v1331 = vpop.f32.mrf.mxu0
      %v1332 = vadd.f32 0.0, %v1331
      %1333 = vmatmul.bf16.gmra.mxu0 %v1249
      %v1334 = vpop.f32.mrf.mxu0
      %v1335 = vadd.f32 0.0, %v1334
      %v1336 = vpop.f32.mrf.mxu0
      %v1337 = vadd.f32 0.0, %v1336
      %1338 = vmatmul.bf16.gmra.mxu0 %v1252
      %v1339 = vpop.f32.mrf.mxu0
      %v1340 = vadd.f32 0.0, %v1339
      %v1341 = vpop.f32.mrf.mxu0
      %v1342 = vadd.f32 0.0, %v1341
      %1343 = vmatmul.bf16.gmra.mxu0 %v1255
      %v1344 = vpop.f32.mrf.mxu0
      %v1345 = vadd.f32 0.0, %v1344
      %v1346 = vpop.f32.mrf.mxu0
      %v1347 = vadd.f32 0.0, %v1346
      %1348 = vdwg.mxu0
      %v1349 = vadd.f32 %v950, %v1270
      %v1350 = vadd.f32 %v952, %v1272
      %v1351 = vadd.f32 %v955, %v1275
      %v1352 = vadd.f32 %v957, %v1277
      %v1353 = vadd.f32 %v960, %v1280
      %v1354 = vadd.f32 %v962, %v1282
      %v1355 = vadd.f32 %v965, %v1285
      %v1356 = vadd.f32 %v967, %v1287
      %v1357 = vadd.f32 %v970, %v1290
      %v1358 = vadd.f32 %v972, %v1292
      %v1359 = vadd.f32 %v975, %v1295
      %v1360 = vadd.f32 %v977, %v1297
      %v1361 = vadd.f32 %v980, %v1300
      %v1362 = vadd.f32 %v982, %v1302
      %v1363 = vadd.f32 %v985, %v1305
      %v1364 = vadd.f32 %v987, %v1307
      %v1365 = vadd.f32 %v990, %v1310
      %v1366 = vadd.f32 %v992, %v1312
      %v1367 = vadd.f32 %v995, %v1315
      %v1368 = vadd.f32 %v997, %v1317
      %v1369 = vadd.f32 %v1000, %v1320
      %v1370 = vadd.f32 %v1002, %v1322
      %v1371 = vadd.f32 %v1005, %v1325
      %v1372 = vadd.f32 %v1007, %v1327
      %v1373 = vadd.f32 %v1010, %v1330
      %v1374 = vadd.f32 %v1012, %v1332
      %v1375 = vadd.f32 %v1015, %v1335
      %v1376 = vadd.f32 %v1017, %v1337
      %v1377 = vadd.f32 %v1020, %v1340
      %v1378 = vadd.f32 %v1022, %v1342
      %v1379 = vadd.f32 %v1025, %v1345
      %v1380 = vadd.f32 %v1027, %v1347
      %v1381 = vld [vmem:[%s1 + $0x4] sm:$0xc]
      %v1384 = vunpack.c.l.b16 %v220
      %v1385 = vunpack.c.l.b16 %v221
      %v1386 = vpack.c.b16 %v1385, %v1384
      %v1388 = vunpack.c.l.b16 %v1381
      %v1389 = vpack.c.b16 %v1388, %v1388
      %v1390 = vrot.slane %v1389, 2
      %v1392 = vsel %vm667, %v1386, 0
      %v1395 = vsel %vm716, %v1390, 0
      %1397 = vmatpush.bf16.msra.mxu0 0
      %1398 = vmatpush.bf16.msra.mxu0 0
      %1399 = vmatpush.bf16.msra.mxu0 0
      %1400 = vmatpush.bf16.msra.mxu0 0
      %1401 = vmatpush.bf16.msra.mxu0 0
      %1402 = vmatpush.bf16.msra.mxu0 0
      %1403 = vmatpush.bf16.msra.mxu0 0
      %1404 = vmatpush.bf16.msra.mxu0 %v1395
      %1405 = vmatmul.bf16.gmra.mxu0 %v893
      %v1406 = vpop.f32.mrf.mxu0
      %v1407 = vadd.f32 0.0, %v1406
      %v1408 = vpop.f32.mrf.mxu0
      %v1409 = vadd.f32 0.0, %v1408
      %1410 = vmatmul.bf16.gmra.mxu0 %v896
      %v1411 = vpop.f32.mrf.mxu0
      %v1412 = vadd.f32 0.0, %v1411
      %v1413 = vpop.f32.mrf.mxu0
      %v1414 = vadd.f32 0.0, %v1413
      %1415 = vmatmul.bf16.gmra.mxu0 %v899
      %v1416 = vpop.f32.mrf.mxu0
      %v1417 = vadd.f32 0.0, %v1416
      %v1418 = vpop.f32.mrf.mxu0
      %v1419 = vadd.f32 0.0, %v1418
      %1420 = vmatmul.bf16.gmra.mxu0 %v902
      %v1421 = vpop.f32.mrf.mxu0
      %v1422 = vadd.f32 0.0, %v1421
      %v1423 = vpop.f32.mrf.mxu0
      %v1424 = vadd.f32 0.0, %v1423
      %1425 = vmatmul.bf16.gmra.mxu0 %v905
      %v1426 = vpop.f32.mrf.mxu0
      %v1427 = vadd.f32 0.0, %v1426
      %v1428 = vpop.f32.mrf.mxu0
      %v1429 = vadd.f32 0.0, %v1428
      %1430 = vmatmul.bf16.gmra.mxu0 %v908
      %v1431 = vpop.f32.mrf.mxu0
      %v1432 = vadd.f32 0.0, %v1431
      %v1433 = vpop.f32.mrf.mxu0
      %v1434 = vadd.f32 0.0, %v1433
      %1435 = vmatmul.bf16.gmra.mxu0 %v911
      %v1436 = vpop.f32.mrf.mxu0
      %v1437 = vadd.f32 0.0, %v1436
      %v1438 = vpop.f32.mrf.mxu0
      %v1439 = vadd.f32 0.0, %v1438
      %1440 = vmatmul.bf16.gmra.mxu0 %v914
      %v1441 = vpop.f32.mrf.mxu0
      %v1442 = vadd.f32 0.0, %v1441
      %v1443 = vpop.f32.mrf.mxu0
      %v1444 = vadd.f32 0.0, %v1443
      %1445 = vmatmul.bf16.gmra.mxu0 %v917
      %v1446 = vpop.f32.mrf.mxu0
      %v1447 = vadd.f32 0.0, %v1446
      %v1448 = vpop.f32.mrf.mxu0
      %v1449 = vadd.f32 0.0, %v1448
      %1450 = vmatmul.bf16.gmra.mxu0 %v920
      %v1451 = vpop.f32.mrf.mxu0
      %v1452 = vadd.f32 0.0, %v1451
      %v1453 = vpop.f32.mrf.mxu0
      %v1454 = vadd.f32 0.0, %v1453
      %1455 = vmatmul.bf16.gmra.mxu0 %v923
      %v1456 = vpop.f32.mrf.mxu0
      %v1457 = vadd.f32 0.0, %v1456
      %v1458 = vpop.f32.mrf.mxu0
      %v1459 = vadd.f32 0.0, %v1458
      %1460 = vmatmul.bf16.gmra.mxu0 %v926
      %v1461 = vpop.f32.mrf.mxu0
      %v1462 = vadd.f32 0.0, %v1461
      %v1463 = vpop.f32.mrf.mxu0
      %v1464 = vadd.f32 0.0, %v1463
      %1465 = vmatmul.bf16.gmra.mxu0 %v929
      %v1466 = vpop.f32.mrf.mxu0
      %v1467 = vadd.f32 0.0, %v1466
      %v1468 = vpop.f32.mrf.mxu0
      %v1469 = vadd.f32 0.0, %v1468
      %1470 = vmatmul.bf16.gmra.mxu0 %v932
      %v1471 = vpop.f32.mrf.mxu0
      %v1472 = vadd.f32 0.0, %v1471
      %v1473 = vpop.f32.mrf.mxu0
      %v1474 = vadd.f32 0.0, %v1473
      %1475 = vmatmul.bf16.gmra.mxu0 %v935
      %v1476 = vpop.f32.mrf.mxu0
      %v1477 = vadd.f32 0.0, %v1476
      %v1478 = vpop.f32.mrf.mxu0
      %v1479 = vadd.f32 0.0, %v1478
      %1480 = vmatmul.bf16.gmra.mxu0 %v1392
      %v1481 = vpop.f32.mrf.mxu0
      %v1482 = vadd.f32 0.0, %v1481
      %v1483 = vpop.f32.mrf.mxu0
      %v1484 = vadd.f32 0.0, %v1483
      %1485 = vdwg.mxu0
      %v1486 = vadd.f32 %v1349, %v1407
      %v1487 = vadd.f32 %v1350, %v1409
      %v1488 = vadd.f32 %v1351, %v1412
      %v1489 = vadd.f32 %v1352, %v1414
      %v1490 = vadd.f32 %v1353, %v1417
      %v1491 = vadd.f32 %v1354, %v1419
      %v1492 = vadd.f32 %v1355, %v1422
      %v1493 = vadd.f32 %v1356, %v1424
      %v1494 = vadd.f32 %v1357, %v1427
      %v1495 = vadd.f32 %v1358, %v1429
      %v1496 = vadd.f32 %v1359, %v1432
      %v1497 = vadd.f32 %v1360, %v1434
      %v1498 = vadd.f32 %v1361, %v1437
      %v1499 = vadd.f32 %v1362, %v1439
      %v1500 = vadd.f32 %v1363, %v1442
      %v1501 = vadd.f32 %v1364, %v1444
      %v1502 = vadd.f32 %v1365, %v1447
      %v1503 = vadd.f32 %v1366, %v1449
      %v1504 = vadd.f32 %v1367, %v1452
      %v1505 = vadd.f32 %v1368, %v1454
      %v1506 = vadd.f32 %v1369, %v1457
      %v1507 = vadd.f32 %v1370, %v1459
      %v1508 = vadd.f32 %v1371, %v1462
      %v1509 = vadd.f32 %v1372, %v1464
      %v1510 = vadd.f32 %v1373, %v1467
      %v1511 = vadd.f32 %v1374, %v1469
      %v1512 = vadd.f32 %v1375, %v1472
      %v1513 = vadd.f32 %v1376, %v1474
      %v1514 = vadd.f32 %v1377, %v1477
      %v1515 = vadd.f32 %v1378, %v1479
      %v1516 = vadd.f32 %v1379, %v1482
      %v1517 = vadd.f32 %v1380, %v1484
      %v1519 = vshrl.u32 %v220, 16
      %v1521 = vrot.slane %v1519, 4
      %v1522 = vshll.u32 %v220, 16
      %v1524 = vrot.slane %v1522, 5
      %v1525 = vor.u32 %v1521, %v1524
      %v1526 = vrot.slane %v1525, 4
      %v1528 = vshll.u32 %v221, 16
      %v1530 = vrot.slane %v1528, 5
      %v1531 = vsel %vm229, %v1526, %v1530
      %v1532 = vshrl.u32 %v221, 16
      %v1534 = vrot.slane %v1532, 4
      %v1535 = vor.u32 %v1534, %v1530
      %v1536 = vrot.slane %v1535, 4
      %v1538 = vshll.u32 %v222, 16
      %v1540 = vrot.slane %v1538, 5
      %v1541 = vsel %vm229, %v1536, %v1540
      %v1542 = vld [vmem:[%s1 + $0x8] sm:$0x3]
      %v1543 = vunpack.c.l.b16 %v1531
      %v1544 = vunpack.c.l.b16 %v1541
      %v1545 = vpack.c.b16 %v1544, %v1543
      %v1547 = vsel %vm667, %v1545, 0
      %v1550 = vsel %vm716, %v1542, 0
      %1552 = vmatpush.bf16.msra.mxu0 0
      %1553 = vmatpush.bf16.msra.mxu0 0
      %1554 = vmatpush.bf16.msra.mxu0 0
      %1555 = vmatpush.bf16.msra.mxu0 0
      %1556 = vmatpush.bf16.msra.mxu0 0
      %1557 = vmatpush.bf16.msra.mxu0 0
      %1558 = vmatpush.bf16.msra.mxu0 0
      %1559 = vmatpush.bf16.msra.mxu0 %v1550
      %1560 = vmatmul.bf16.gmra.mxu0 %v672
      %v1561 = vpop.f32.mrf.mxu0
      %v1562 = vadd.f32 0.0, %v1561
      %v1563 = vpop.f32.mrf.mxu0
      %v1564 = vadd.f32 0.0, %v1563
      %1565 = vmatmul.bf16.gmra.mxu0 %v675
      %v1566 = vpop.f32.mrf.mxu0
      %v1567 = vadd.f32 0.0, %v1566
      %v1568 = vpop.f32.mrf.mxu0
      %v1569 = vadd.f32 0.0, %v1568
      %1570 = vmatmul.bf16.gmra.mxu0 %v678
      %v1571 = vpop.f32.mrf.mxu0
      %v1572 = vadd.f32 0.0, %v1571
      %v1573 = vpop.f32.mrf.mxu0
      %v1574 = vadd.f32 0.0, %v1573
      %1575 = vmatmul.bf16.gmra.mxu0 %v681
      %v1576 = vpop.f32.mrf.mxu0
      %v1577 = vadd.f32 0.0, %v1576
      %v1578 = vpop.f32.mrf.mxu0
      %v1579 = vadd.f32 0.0, %v1578
      %1580 = vmatmul.bf16.gmra.mxu0 %v684
      %v1581 = vpop.f32.mrf.mxu0
      %v1582 = vadd.f32 0.0, %v1581
      %v1583 = vpop.f32.mrf.mxu0
      %v1584 = vadd.f32 0.0, %v1583
      %1585 = vmatmul.bf16.gmra.mxu0 %v687
      %v1586 = vpop.f32.mrf.mxu0
      %v1587 = vadd.f32 0.0, %v1586
      %v1588 = vpop.f32.mrf.mxu0
      %v1589 = vadd.f32 0.0, %v1588
      %1590 = vmatmul.bf16.gmra.mxu0 %v690
      %v1591 = vpop.f32.mrf.mxu0
      %v1592 = vadd.f32 0.0, %v1591
      %v1593 = vpop.f32.mrf.mxu0
      %v1594 = vadd.f32 0.0, %v1593
      %1595 = vmatmul.bf16.gmra.mxu0 %v693
      %v1596 = vpop.f32.mrf.mxu0
      %v1597 = vadd.f32 0.0, %v1596
      %v1598 = vpop.f32.mrf.mxu0
      %v1599 = vadd.f32 0.0, %v1598
      %1600 = vmatmul.bf16.gmra.mxu0 %v696
      %v1601 = vpop.f32.mrf.mxu0
      %v1602 = vadd.f32 0.0, %v1601
      %v1603 = vpop.f32.mrf.mxu0
      %v1604 = vadd.f32 0.0, %v1603
      %1605 = vmatmul.bf16.gmra.mxu0 %v699
      %v1606 = vpop.f32.mrf.mxu0
      %v1607 = vadd.f32 0.0, %v1606
      %v1608 = vpop.f32.mrf.mxu0
      %v1609 = vadd.f32 0.0, %v1608
      %1610 = vmatmul.bf16.gmra.mxu0 %v702
      %v1611 = vpop.f32.mrf.mxu0
      %v1612 = vadd.f32 0.0, %v1611
      %v1613 = vpop.f32.mrf.mxu0
      %v1614 = vadd.f32 0.0, %v1613
      %1615 = vmatmul.bf16.gmra.mxu0 %v705
      %v1616 = vpop.f32.mrf.mxu0
      %v1617 = vadd.f32 0.0, %v1616
      %v1618 = vpop.f32.mrf.mxu0
      %v1619 = vadd.f32 0.0, %v1618
      %1620 = vmatmul.bf16.gmra.mxu0 %v708
      %v1621 = vpop.f32.mrf.mxu0
      %v1622 = vadd.f32 0.0, %v1621
      %v1623 = vpop.f32.mrf.mxu0
      %v1624 = vadd.f32 0.0, %v1623
      %1625 = vmatmul.bf16.gmra.mxu0 %v711
      %v1626 = vpop.f32.mrf.mxu0
      %v1627 = vadd.f32 0.0, %v1626
      %v1628 = vpop.f32.mrf.mxu0
      %v1629 = vadd.f32 0.0, %v1628
      %1630 = vmatmul.bf16.gmra.mxu0 %v714
      %v1631 = vpop.f32.mrf.mxu0
      %v1632 = vadd.f32 0.0, %v1631
      %v1633 = vpop.f32.mrf.mxu0
      %v1634 = vadd.f32 0.0, %v1633
      %1635 = vmatmul.bf16.gmra.mxu0 %v1547
      %v1636 = vpop.f32.mrf.mxu0
      %v1637 = vadd.f32 0.0, %v1636
      %v1638 = vpop.f32.mrf.mxu0
      %v1639 = vadd.f32 0.0, %v1638
      %1640 = vdwg.mxu0
      %v1641 = vadd.f32 %v1486, %v1562
      %v1642 = vadd.f32 %v1487, %v1564
      %v1643 = vadd.f32 %v1488, %v1567
      %v1644 = vadd.f32 %v1489, %v1569
      %v1645 = vadd.f32 %v1490, %v1572
      %v1646 = vadd.f32 %v1491, %v1574
      %v1647 = vadd.f32 %v1492, %v1577
      %v1648 = vadd.f32 %v1493, %v1579
      %v1649 = vadd.f32 %v1494, %v1582
      %v1650 = vadd.f32 %v1495, %v1584
      %v1651 = vadd.f32 %v1496, %v1587
      %v1652 = vadd.f32 %v1497, %v1589
      %v1653 = vadd.f32 %v1498, %v1592
      %v1654 = vadd.f32 %v1499, %v1594
      %v1655 = vadd.f32 %v1500, %v1597
      %v1656 = vadd.f32 %v1501, %v1599
      %v1657 = vadd.f32 %v1502, %v1602
      %v1658 = vadd.f32 %v1503, %v1604
      %v1659 = vadd.f32 %v1504, %v1607
      %v1660 = vadd.f32 %v1505, %v1609
      %v1661 = vadd.f32 %v1506, %v1612
      %v1662 = vadd.f32 %v1507, %v1614
      %v1663 = vadd.f32 %v1508, %v1617
      %v1664 = vadd.f32 %v1509, %v1619
      %v1665 = vadd.f32 %v1510, %v1622
      %v1666 = vadd.f32 %v1511, %v1624
      %v1667 = vadd.f32 %v1512, %v1627
      %v1668 = vadd.f32 %v1513, %v1629
      %v1669 = vadd.f32 %v1514, %v1632
      %v1670 = vadd.f32 %v1515, %v1634
      %v1671 = vadd.f32 %v1516, %v1637
      %v1672 = vadd.f32 %v1517, %v1639
      %v1674 = vrot.slane %v220, 5
      %v1675 = vrot.slane %v1674, 4
      %v1676 = vrot.slane %v221, 5
      %v1677 = vsel %vm1047, %v1675, %v1676
      %v1678 = vrot.slane %v1676, 4
      %v1679 = vrot.slane %v222, 5
      %v1680 = vsel %vm1047, %v1678, %v1679
      %v1681 = vld [vmem:[%s1 + $0x8] sm:$0xc]
      %v1682 = vunpack.c.l.b16 %v1677
      %v1683 = vunpack.c.l.b16 %v1680
      %v1684 = vpack.c.b16 %v1683, %v1682
      %v1686 = vunpack.c.l.b16 %v1681
      %v1687 = vpack.c.b16 %v1686, %v1686
      %v1688 = vrot.slane %v1687, 2
      %v1690 = vsel %vm667, %v1684, 0
      %v1693 = vsel %vm716, %v1688, 0
      %1695 = vmatpush.bf16.msra.mxu0 0
      %1696 = vmatpush.bf16.msra.mxu0 0
      %1697 = vmatpush.bf16.msra.mxu0 0
      %1698 = vmatpush.bf16.msra.mxu0 0
      %1699 = vmatpush.bf16.msra.mxu0 0
      %1700 = vmatpush.bf16.msra.mxu0 0
      %1701 = vmatpush.bf16.msra.mxu0 0
      %1702 = vmatpush.bf16.msra.mxu0 %v1693
      %1703 = vmatmul.bf16.gmra.mxu0 %v1213
      %v1704 = vpop.f32.mrf.mxu0
      %v1705 = vadd.f32 0.0, %v1704
      %v1706 = vpop.f32.mrf.mxu0
      %v1707 = vadd.f32 0.0, %v1706
      %1708 = vmatmul.bf16.gmra.mxu0 %v1216
      %v1709 = vpop.f32.mrf.mxu0
      %v1710 = vadd.f32 0.0, %v1709
      %v1711 = vpop.f32.mrf.mxu0
      %v1712 = vadd.f32 0.0, %v1711
      %1713 = vmatmul.bf16.gmra.mxu0 %v1219
      %v1714 = vpop.f32.mrf.mxu0
      %v1715 = vadd.f32 0.0, %v1714
      %v1716 = vpop.f32.mrf.mxu0
      %v1717 = vadd.f32 0.0, %v1716
      %1718 = vmatmul.bf16.gmra.mxu0 %v1222
      %v1719 = vpop.f32.mrf.mxu0
      %v1720 = vadd.f32 0.0, %v1719
      %v1721 = vpop.f32.mrf.mxu0
      %v1722 = vadd.f32 0.0, %v1721
      %1723 = vmatmul.bf16.gmra.mxu0 %v1225
      %v1724 = vpop.f32.mrf.mxu0
      %v1725 = vadd.f32 0.0, %v1724
      %v1726 = vpop.f32.mrf.mxu0
      %v1727 = vadd.f32 0.0, %v1726
      %1728 = vmatmul.bf16.gmra.mxu0 %v1228
      %v1729 = vpop.f32.mrf.mxu0
      %v1730 = vadd.f32 0.0, %v1729
      %v1731 = vpop.f32.mrf.mxu0
      %v1732 = vadd.f32 0.0, %v1731
      %1733 = vmatmul.bf16.gmra.mxu0 %v1231
      %v1734 = vpop.f32.mrf.mxu0
      %v1735 = vadd.f32 0.0, %v1734
      %v1736 = vpop.f32.mrf.mxu0
      %v1737 = vadd.f32 0.0, %v1736
      %1738 = vmatmul.bf16.gmra.mxu0 %v1234
      %v1739 = vpop.f32.mrf.mxu0
      %v1740 = vadd.f32 0.0, %v1739
      %v1741 = vpop.f32.mrf.mxu0
      %v1742 = vadd.f32 0.0, %v1741
      %1743 = vmatmul.bf16.gmra.mxu0 %v1237
      %v1744 = vpop.f32.mrf.mxu0
      %v1745 = vadd.f32 0.0, %v1744
      %v1746 = vpop.f32.mrf.mxu0
      %v1747 = vadd.f32 0.0, %v1746
      %1748 = vmatmul.bf16.gmra.mxu0 %v1240
      %v1749 = vpop.f32.mrf.mxu0
      %v1750 = vadd.f32 0.0, %v1749
      %v1751 = vpop.f32.mrf.mxu0
      %v1752 = vadd.f32 0.0, %v1751
      %1753 = vmatmul.bf16.gmra.mxu0 %v1243
      %v1754 = vpop.f32.mrf.mxu0
      %v1755 = vadd.f32 0.0, %v1754
      %v1756 = vpop.f32.mrf.mxu0
      %v1757 = vadd.f32 0.0, %v1756
      %1758 = vmatmul.bf16.gmra.mxu0 %v1246
      %v1759 = vpop.f32.mrf.mxu0
      %v1760 = vadd.f32 0.0, %v1759
      %v1761 = vpop.f32.mrf.mxu0
      %v1762 = vadd.f32 0.0, %v1761
      %1763 = vmatmul.bf16.gmra.mxu0 %v1249
      %v1764 = vpop.f32.mrf.mxu0
      %v1765 = vadd.f32 0.0, %v1764
      %v1766 = vpop.f32.mrf.mxu0
      %v1767 = vadd.f32 0.0, %v1766
      %1768 = vmatmul.bf16.gmra.mxu0 %v1252
      %v1769 = vpop.f32.mrf.mxu0
      %v1770 = vadd.f32 0.0, %v1769
      %v1771 = vpop.f32.mrf.mxu0
      %v1772 = vadd.f32 0.0, %v1771
      %1773 = vmatmul.bf16.gmra.mxu0 %v1255
      %v1774 = vpop.f32.mrf.mxu0
      %v1775 = vadd.f32 0.0, %v1774
      %v1776 = vpop.f32.mrf.mxu0
      %v1777 = vadd.f32 0.0, %v1776
      %1778 = vmatmul.bf16.gmra.mxu0 %v1690
      %v1779 = vpop.f32.mrf.mxu0
      %v1780 = vadd.f32 0.0, %v1779
      %v1781 = vpop.f32.mrf.mxu0
      %v1782 = vadd.f32 0.0, %v1781
      %1783 = vdwg.mxu0
      %v1784 = vadd.f32 %v1641, %v1705
      %v1785 = vadd.f32 %v1642, %v1707
      %v1786 = vadd.f32 %v1643, %v1710
      %v1787 = vadd.f32 %v1644, %v1712
      %v1788 = vadd.f32 %v1645, %v1715
      %v1789 = vadd.f32 %v1646, %v1717
      %v1790 = vadd.f32 %v1647, %v1720
      %v1791 = vadd.f32 %v1648, %v1722
      %v1792 = vadd.f32 %v1649, %v1725
      %v1793 = vadd.f32 %v1650, %v1727
      %v1794 = vadd.f32 %v1651, %v1730
      %v1795 = vadd.f32 %v1652, %v1732
      %v1796 = vadd.f32 %v1653, %v1735
      %v1797 = vadd.f32 %v1654, %v1737
      %v1798 = vadd.f32 %v1655, %v1740
      %v1799 = vadd.f32 %v1656, %v1742
      %v1800 = vadd.f32 %v1657, %v1745
      %v1801 = vadd.f32 %v1658, %v1747
      %v1802 = vadd.f32 %v1659, %v1750
      %v1803 = vadd.f32 %v1660, %v1752
      %v1804 = vadd.f32 %v1661, %v1755
      %v1805 = vadd.f32 %v1662, %v1757
      %v1806 = vadd.f32 %v1663, %v1760
      %v1807 = vadd.f32 %v1664, %v1762
      %v1808 = vadd.f32 %v1665, %v1765
      %v1809 = vadd.f32 %v1666, %v1767
      %v1810 = vadd.f32 %v1667, %v1770
      %v1811 = vadd.f32 %v1668, %v1772
      %v1812 = vadd.f32 %v1669, %v1775
      %v1813 = vadd.f32 %v1670, %v1777
      %v1814 = vadd.f32 %v1671, %v1780
      %v1815 = vadd.f32 %v1672, %v1782
      %v1816 = vld [vmem:[%s1 + $0xc] sm:$0x3]
      %v1819 = vunpack.c.l.b16 %v223
      %v1820 = vunpack.c.l.b16 %v224
      %v1821 = vpack.c.b16 %v1820, %v1819
      %v1823 = vsel %vm667, %v1821, 0
      %v1826 = vsel %vm716, %v1816, 0
      %1828 = vmatpush.bf16.msra.mxu0 0
      %1829 = vmatpush.bf16.msra.mxu0 0
      %1830 = vmatpush.bf16.msra.mxu0 0
      %1831 = vmatpush.bf16.msra.mxu0 0
      %1832 = vmatpush.bf16.msra.mxu0 0
      %1833 = vmatpush.bf16.msra.mxu0 0
      %1834 = vmatpush.bf16.msra.mxu0 0
      %1835 = vmatpush.bf16.msra.mxu0 %v1826
      %1836 = vmatmul.bf16.gmra.mxu0 %v896
      %v1837 = vpop.f32.mrf.mxu0
      %v1838 = vadd.f32 0.0, %v1837
      %v1839 = vpop.f32.mrf.mxu0
      %v1840 = vadd.f32 0.0, %v1839
      %1841 = vmatmul.bf16.gmra.mxu0 %v899
      %v1842 = vpop.f32.mrf.mxu0
      %v1843 = vadd.f32 0.0, %v1842
      %v1844 = vpop.f32.mrf.mxu0
      %v1845 = vadd.f32 0.0, %v1844
      %1846 = vmatmul.bf16.gmra.mxu0 %v902
      %v1847 = vpop.f32.mrf.mxu0
      %v1848 = vadd.f32 0.0, %v1847
      %v1849 = vpop.f32.mrf.mxu0
      %v1850 = vadd.f32 0.0, %v1849
      %1851 = vmatmul.bf16.gmra.mxu0 %v905
      %v1852 = vpop.f32.mrf.mxu0
      %v1853 = vadd.f32 0.0, %v1852
      %v1854 = vpop.f32.mrf.mxu0
      %v1855 = vadd.f32 0.0, %v1854
      %1856 = vmatmul.bf16.gmra.mxu0 %v908
      %v1857 = vpop.f32.mrf.mxu0
      %v1858 = vadd.f32 0.0, %v1857
      %v1859 = vpop.f32.mrf.mxu0
      %v1860 = vadd.f32 0.0, %v1859
      %1861 = vmatmul.bf16.gmra.mxu0 %v911
      %v1862 = vpop.f32.mrf.mxu0
      %v1863 = vadd.f32 0.0, %v1862
      %v1864 = vpop.f32.mrf.mxu0
      %v1865 = vadd.f32 0.0, %v1864
      %1866 = vmatmul.bf16.gmra.mxu0 %v914
      %v1867 = vpop.f32.mrf.mxu0
      %v1868 = vadd.f32 0.0, %v1867
      %v1869 = vpop.f32.mrf.mxu0
      %v1870 = vadd.f32 0.0, %v1869
      %1871 = vmatmul.bf16.gmra.mxu0 %v917
      %v1872 = vpop.f32.mrf.mxu0
      %v1873 = vadd.f32 0.0, %v1872
      %v1874 = vpop.f32.mrf.mxu0
      %v1875 = vadd.f32 0.0, %v1874
      %1876 = vmatmul.bf16.gmra.mxu0 %v920
      %v1877 = vpop.f32.mrf.mxu0
      %v1878 = vadd.f32 0.0, %v1877
      %v1879 = vpop.f32.mrf.mxu0
      %v1880 = vadd.f32 0.0, %v1879
      %1881 = vmatmul.bf16.gmra.mxu0 %v923
      %v1882 = vpop.f32.mrf.mxu0
      %v1883 = vadd.f32 0.0, %v1882
      %v1884 = vpop.f32.mrf.mxu0
      %v1885 = vadd.f32 0.0, %v1884
      %1886 = vmatmul.bf16.gmra.mxu0 %v926
      %v1887 = vpop.f32.mrf.mxu0
      %v1888 = vadd.f32 0.0, %v1887
      %v1889 = vpop.f32.mrf.mxu0
      %v1890 = vadd.f32 0.0, %v1889
      %1891 = vmatmul.bf16.gmra.mxu0 %v929
      %v1892 = vpop.f32.mrf.mxu0
      %v1893 = vadd.f32 0.0, %v1892
      %v1894 = vpop.f32.mrf.mxu0
      %v1895 = vadd.f32 0.0, %v1894
      %1896 = vmatmul.bf16.gmra.mxu0 %v932
      %v1897 = vpop.f32.mrf.mxu0
      %v1898 = vadd.f32 0.0, %v1897
      %v1899 = vpop.f32.mrf.mxu0
      %v1900 = vadd.f32 0.0, %v1899
      %1901 = vmatmul.bf16.gmra.mxu0 %v935
      %v1902 = vpop.f32.mrf.mxu0
      %v1903 = vadd.f32 0.0, %v1902
      %v1904 = vpop.f32.mrf.mxu0
      %v1905 = vadd.f32 0.0, %v1904
      %1906 = vmatmul.bf16.gmra.mxu0 %v1392
      %v1907 = vpop.f32.mrf.mxu0
      %v1908 = vadd.f32 0.0, %v1907
      %v1909 = vpop.f32.mrf.mxu0
      %v1910 = vadd.f32 0.0, %v1909
      %1911 = vmatmul.bf16.gmra.mxu0 %v1823
      %v1912 = vpop.f32.mrf.mxu0
      %v1913 = vadd.f32 0.0, %v1912
      %v1914 = vpop.f32.mrf.mxu0
      %v1915 = vadd.f32 0.0, %v1914
      %1916 = vdwg.mxu0
      %v1917 = vadd.f32 %v1784, %v1838
      %v1918 = vadd.f32 %v1785, %v1840
      %v1919 = vadd.f32 %v1786, %v1843
      %v1920 = vadd.f32 %v1787, %v1845
      %v1921 = vadd.f32 %v1788, %v1848
      %v1922 = vadd.f32 %v1789, %v1850
      %v1923 = vadd.f32 %v1790, %v1853
      %v1924 = vadd.f32 %v1791, %v1855
      %v1925 = vadd.f32 %v1792, %v1858
      %v1926 = vadd.f32 %v1793, %v1860
      %v1927 = vadd.f32 %v1794, %v1863
      %v1928 = vadd.f32 %v1795, %v1865
      %v1929 = vadd.f32 %v1796, %v1868
      %v1930 = vadd.f32 %v1797, %v1870
      %v1931 = vadd.f32 %v1798, %v1873
      %v1932 = vadd.f32 %v1799, %v1875
      %v1933 = vadd.f32 %v1800, %v1878
      %v1934 = vadd.f32 %v1801, %v1880
      %v1935 = vadd.f32 %v1802, %v1883
      %v1936 = vadd.f32 %v1803, %v1885
      %v1937 = vadd.f32 %v1804, %v1888
      %v1938 = vadd.f32 %v1805, %v1890
      %v1939 = vadd.f32 %v1806, %v1893
      %v1940 = vadd.f32 %v1807, %v1895
      %v1941 = vadd.f32 %v1808, %v1898
      %v1942 = vadd.f32 %v1809, %v1900
      %v1943 = vadd.f32 %v1810, %v1903
      %v1944 = vadd.f32 %v1811, %v1905
      %v1945 = vadd.f32 %v1812, %v1908
      %v1946 = vadd.f32 %v1813, %v1910
      %v1947 = vadd.f32 %v1814, %v1913
      %v1948 = vadd.f32 %v1815, %v1915
      %v1950 = vshrl.u32 %v223, 16
      %v1952 = vrot.slane %v1950, 4
      %v1953 = vshll.u32 %v223, 16
      %v1955 = vrot.slane %v1953, 5
      %v1956 = vor.u32 %v1952, %v1955
      %v1957 = vrot.slane %v1956, 4
      %v1959 = vshll.u32 %v224, 16
      %v1961 = vrot.slane %v1959, 5
      %v1962 = vsel %vm229, %v1957, %v1961
      %v1963 = vshrl.u32 %v224, 16
      %v1965 = vrot.slane %v1963, 4
      %v1966 = vor.u32 %v1965, %v1961
      %v1967 = vrot.slane %v1966, 4
      %v1969 = vshll.u32 %v225, 16
      %v1971 = vrot.slane %v1969, 5
      %v1972 = vsel %vm229, %v1967, %v1971
      %v1973 = vld [vmem:[%s1 + $0xc] sm:$0xc]
      %v1974 = vunpack.c.l.b16 %v1962
      %v1975 = vunpack.c.l.b16 %v1972
      %v1976 = vpack.c.b16 %v1975, %v1974
      %v1978 = vunpack.c.l.b16 %v1973
      %v1979 = vpack.c.b16 %v1978, %v1978
      %v1980 = vrot.slane %v1979, 2
      %v1982 = vsel %vm667, %v1976, 0
      %v1985 = vsel %vm716, %v1980, 0
      %1987 = vmatpush.bf16.msra.mxu0 0
      %1988 = vmatpush.bf16.msra.mxu0 0
      %1989 = vmatpush.bf16.msra.mxu0 0
      %1990 = vmatpush.bf16.msra.mxu0 0
      %1991 = vmatpush.bf16.msra.mxu0 0
      %1992 = vmatpush.bf16.msra.mxu0 0
      %1993 = vmatpush.bf16.msra.mxu0 0
      %1994 = vmatpush.bf16.msra.mxu0 %v1985
      %1995 = vmatmul.bf16.gmra.mxu0 %v675
      %v1996 = vpop.f32.mrf.mxu0
      %v1997 = vadd.f32 0.0, %v1996
      %v1998 = vpop.f32.mrf.mxu0
      %v1999 = vadd.f32 0.0, %v1998
      %2000 = vmatmul.bf16.gmra.mxu0 %v678
      %v2001 = vpop.f32.mrf.mxu0
      %v2002 = vadd.f32 0.0, %v2001
      %v2003 = vpop.f32.mrf.mxu0
      %v2004 = vadd.f32 0.0, %v2003
      %2005 = vmatmul.bf16.gmra.mxu0 %v681
      %v2006 = vpop.f32.mrf.mxu0
      %v2007 = vadd.f32 0.0, %v2006
      %v2008 = vpop.f32.mrf.mxu0
      %v2009 = vadd.f32 0.0, %v2008
      %2010 = vmatmul.bf16.gmra.mxu0 %v684
      %v2011 = vpop.f32.mrf.mxu0
      %v2012 = vadd.f32 0.0, %v2011
      %v2013 = vpop.f32.mrf.mxu0
      %v2014 = vadd.f32 0.0, %v2013
      %2015 = vmatmul.bf16.gmra.mxu0 %v687
      %v2016 = vpop.f32.mrf.mxu0
      %v2017 = vadd.f32 0.0, %v2016
      %v2018 = vpop.f32.mrf.mxu0
      %v2019 = vadd.f32 0.0, %v2018
      %2020 = vmatmul.bf16.gmra.mxu0 %v690
      %v2021 = vpop.f32.mrf.mxu0
      %v2022 = vadd.f32 0.0, %v2021
      %v2023 = vpop.f32.mrf.mxu0
      %v2024 = vadd.f32 0.0, %v2023
      %2025 = vmatmul.bf16.gmra.mxu0 %v693
      %v2026 = vpop.f32.mrf.mxu0
      %v2027 = vadd.f32 0.0, %v2026
      %v2028 = vpop.f32.mrf.mxu0
      %v2029 = vadd.f32 0.0, %v2028
      %2030 = vmatmul.bf16.gmra.mxu0 %v696
      %v2031 = vpop.f32.mrf.mxu0
      %v2032 = vadd.f32 0.0, %v2031
      %v2033 = vpop.f32.mrf.mxu0
      %v2034 = vadd.f32 0.0, %v2033
      %2035 = vmatmul.bf16.gmra.mxu0 %v699
      %v2036 = vpop.f32.mrf.mxu0
      %v2037 = vadd.f32 0.0, %v2036
      %v2038 = vpop.f32.mrf.mxu0
      %v2039 = vadd.f32 0.0, %v2038
      %2040 = vmatmul.bf16.gmra.mxu0 %v702
      %v2041 = vpop.f32.mrf.mxu0
      %v2042 = vadd.f32 0.0, %v2041
      %v2043 = vpop.f32.mrf.mxu0
      %v2044 = vadd.f32 0.0, %v2043
      %2045 = vmatmul.bf16.gmra.mxu0 %v705
      %v2046 = vpop.f32.mrf.mxu0
      %v2047 = vadd.f32 0.0, %v2046
      %v2048 = vpop.f32.mrf.mxu0
      %v2049 = vadd.f32 0.0, %v2048
      %2050 = vmatmul.bf16.gmra.mxu0 %v708
      %v2051 = vpop.f32.mrf.mxu0
      %v2052 = vadd.f32 0.0, %v2051
      %v2053 = vpop.f32.mrf.mxu0
      %v2054 = vadd.f32 0.0, %v2053
      %2055 = vmatmul.bf16.gmra.mxu0 %v711
      %v2056 = vpop.f32.mrf.mxu0
      %v2057 = vadd.f32 0.0, %v2056
      %v2058 = vpop.f32.mrf.mxu0
      %v2059 = vadd.f32 0.0, %v2058
      %2060 = vmatmul.bf16.gmra.mxu0 %v714
      %v2061 = vpop.f32.mrf.mxu0
      %v2062 = vadd.f32 0.0, %v2061
      %v2063 = vpop.f32.mrf.mxu0
      %v2064 = vadd.f32 0.0, %v2063
      %2065 = vmatmul.bf16.gmra.mxu0 %v1547
      %v2066 = vpop.f32.mrf.mxu0
      %v2067 = vadd.f32 0.0, %v2066
      %v2068 = vpop.f32.mrf.mxu0
      %v2069 = vadd.f32 0.0, %v2068
      %2070 = vmatmul.bf16.gmra.mxu0 %v1982
      %v2071 = vpop.f32.mrf.mxu0
      %v2072 = vadd.f32 0.0, %v2071
      %v2073 = vpop.f32.mrf.mxu0
      %v2074 = vadd.f32 0.0, %v2073
      %2075 = vdwg.mxu0
      %v2076 = vadd.f32 %v1917, %v1997
      %v2077 = vadd.f32 %v1918, %v1999
      %v2078 = vadd.f32 %v1919, %v2002
      %v2079 = vadd.f32 %v1920, %v2004
      %v2080 = vadd.f32 %v1921, %v2007
      %v2081 = vadd.f32 %v1922, %v2009
      %v2082 = vadd.f32 %v1923, %v2012
      %v2083 = vadd.f32 %v1924, %v2014
      %v2084 = vadd.f32 %v1925, %v2017
      %v2085 = vadd.f32 %v1926, %v2019
      %v2086 = vadd.f32 %v1927, %v2022
      %v2087 = vadd.f32 %v1928, %v2024
      %v2088 = vadd.f32 %v1929, %v2027
      %v2089 = vadd.f32 %v1930, %v2029
      %v2090 = vadd.f32 %v1931, %v2032
      %v2091 = vadd.f32 %v1932, %v2034
      %v2092 = vadd.f32 %v1933, %v2037
      %v2093 = vadd.f32 %v1934, %v2039
      %v2094 = vadd.f32 %v1935, %v2042
      %v2095 = vadd.f32 %v1936, %v2044
      %v2096 = vadd.f32 %v1937, %v2047
      %v2097 = vadd.f32 %v1938, %v2049
      %v2098 = vadd.f32 %v1939, %v2052
      %v2099 = vadd.f32 %v1940, %v2054
      %v2100 = vadd.f32 %v1941, %v2057
      %v2101 = vadd.f32 %v1942, %v2059
      %v2102 = vadd.f32 %v1943, %v2062
      %v2103 = vadd.f32 %v1944, %v2064
      %v2104 = vadd.f32 %v1945, %v2067
      %v2105 = vadd.f32 %v1946, %v2069
      %v2106 = vadd.f32 %v1947, %v2072
      %v2107 = vadd.f32 %v1948, %v2074
      %v2109 = vrot.slane %v223, 5
      %v2110 = vrot.slane %v2109, 4
      %v2111 = vrot.slane %v224, 5
      %v2112 = vsel %vm1047, %v2110, %v2111
      %v2113 = vrot.slane %v2111, 4
      %v2114 = vrot.slane %v225, 5
      %v2115 = vsel %vm1047, %v2113, %v2114
      %v2116 = vld [vmem:[%s1 + $0x10] sm:$0x3]
      %v2117 = vunpack.c.l.b16 %v2112
      %v2118 = vunpack.c.l.b16 %v2115
      %v2119 = vpack.c.b16 %v2118, %v2117
      %v2121 = vsel %vm667, %v2119, 0
      %v2124 = vsel %vm716, %v2116, 0
      %2126 = vmatpush.bf16.msra.mxu0 0
      %2127 = vmatpush.bf16.msra.mxu0 0
      %2128 = vmatpush.bf16.msra.mxu0 0
      %2129 = vmatpush.bf16.msra.mxu0 0
      %2130 = vmatpush.bf16.msra.mxu0 0
      %2131 = vmatpush.bf16.msra.mxu0 0
      %2132 = vmatpush.bf16.msra.mxu0 0
      %2133 = vmatpush.bf16.msra.mxu0 %v2124
      %2134 = vmatmul.bf16.gmra.mxu0 %v1216
      %v2135 = vpop.f32.mrf.mxu0
      %v2136 = vadd.f32 0.0, %v2135
      %v2137 = vpop.f32.mrf.mxu0
      %v2138 = vadd.f32 0.0, %v2137
      %2139 = vmatmul.bf16.gmra.mxu0 %v1219
      %v2140 = vpop.f32.mrf.mxu0
      %v2141 = vadd.f32 0.0, %v2140
      %v2142 = vpop.f32.mrf.mxu0
      %v2143 = vadd.f32 0.0, %v2142
      %2144 = vmatmul.bf16.gmra.mxu0 %v1222
      %v2145 = vpop.f32.mrf.mxu0
      %v2146 = vadd.f32 0.0, %v2145
      %v2147 = vpop.f32.mrf.mxu0
      %v2148 = vadd.f32 0.0, %v2147
      %2149 = vmatmul.bf16.gmra.mxu0 %v1225
      %v2150 = vpop.f32.mrf.mxu0
      %v2151 = vadd.f32 0.0, %v2150
      %v2152 = vpop.f32.mrf.mxu0
      %v2153 = vadd.f32 0.0, %v2152
      %2154 = vmatmul.bf16.gmra.mxu0 %v1228
      %v2155 = vpop.f32.mrf.mxu0
      %v2156 = vadd.f32 0.0, %v2155
      %v2157 = vpop.f32.mrf.mxu0
      %v2158 = vadd.f32 0.0, %v2157
      %2159 = vmatmul.bf16.gmra.mxu0 %v1231
      %v2160 = vpop.f32.mrf.mxu0
      %v2161 = vadd.f32 0.0, %v2160
      %v2162 = vpop.f32.mrf.mxu0
      %v2163 = vadd.f32 0.0, %v2162
      %2164 = vmatmul.bf16.gmra.mxu0 %v1234
      %v2165 = vpop.f32.mrf.mxu0
      %v2166 = vadd.f32 0.0, %v2165
      %v2167 = vpop.f32.mrf.mxu0
      %v2168 = vadd.f32 0.0, %v2167
      %2169 = vmatmul.bf16.gmra.mxu0 %v1237
      %v2170 = vpop.f32.mrf.mxu0
      %v2171 = vadd.f32 0.0, %v2170
      %v2172 = vpop.f32.mrf.mxu0
      %v2173 = vadd.f32 0.0, %v2172
      %2174 = vmatmul.bf16.gmra.mxu0 %v1240
      %v2175 = vpop.f32.mrf.mxu0
      %v2176 = vadd.f32 0.0, %v2175
      %v2177 = vpop.f32.mrf.mxu0
      %v2178 = vadd.f32 0.0, %v2177
      %2179 = vmatmul.bf16.gmra.mxu0 %v1243
      %v2180 = vpop.f32.mrf.mxu0
      %v2181 = vadd.f32 0.0, %v2180
      %v2182 = vpop.f32.mrf.mxu0
      %v2183 = vadd.f32 0.0, %v2182
      %2184 = vmatmul.bf16.gmra.mxu0 %v1246
      %v2185 = vpop.f32.mrf.mxu0
      %v2186 = vadd.f32 0.0, %v2185
      %v2187 = vpop.f32.mrf.mxu0
      %v2188 = vadd.f32 0.0, %v2187
      %2189 = vmatmul.bf16.gmra.mxu0 %v1249
      %v2190 = vpop.f32.mrf.mxu0
      %v2191 = vadd.f32 0.0, %v2190
      %v2192 = vpop.f32.mrf.mxu0
      %v2193 = vadd.f32 0.0, %v2192
      %2194 = vmatmul.bf16.gmra.mxu0 %v1252
      %v2195 = vpop.f32.mrf.mxu0
      %v2196 = vadd.f32 0.0, %v2195
      %v2197 = vpop.f32.mrf.mxu0
      %v2198 = vadd.f32 0.0, %v2197
      %2199 = vmatmul.bf16.gmra.mxu0 %v1255
      %v2200 = vpop.f32.mrf.mxu0
      %v2201 = vadd.f32 0.0, %v2200
      %v2202 = vpop.f32.mrf.mxu0
      %v2203 = vadd.f32 0.0, %v2202
      %2204 = vmatmul.bf16.gmra.mxu0 %v1690
      %v2205 = vpop.f32.mrf.mxu0
      %v2206 = vadd.f32 0.0, %v2205
      %v2207 = vpop.f32.mrf.mxu0
      %v2208 = vadd.f32 0.0, %v2207
      %2209 = vmatmul.bf16.gmra.mxu0 %v2121
      %v2210 = vpop.f32.mrf.mxu0
      %v2211 = vadd.f32 0.0, %v2210
      %v2212 = vpop.f32.mrf.mxu0
      %v2213 = vadd.f32 0.0, %v2212
      %2214 = vdwg.mxu0
      %v2215 = vadd.f32 %v2076, %v2136
      %v2216 = vadd.f32 %v2077, %v2138
      %v2217 = vadd.f32 %v2078, %v2141
      %v2218 = vadd.f32 %v2079, %v2143
      %v2219 = vadd.f32 %v2080, %v2146
      %v2220 = vadd.f32 %v2081, %v2148
      %v2221 = vadd.f32 %v2082, %v2151
      %v2222 = vadd.f32 %v2083, %v2153
      %v2223 = vadd.f32 %v2084, %v2156
      %v2224 = vadd.f32 %v2085, %v2158
      %v2225 = vadd.f32 %v2086, %v2161
      %v2226 = vadd.f32 %v2087, %v2163
      %v2227 = vadd.f32 %v2088, %v2166
      %v2228 = vadd.f32 %v2089, %v2168
      %v2229 = vadd.f32 %v2090, %v2171
      %v2230 = vadd.f32 %v2091, %v2173
      %v2231 = vadd.f32 %v2092, %v2176
      %v2232 = vadd.f32 %v2093, %v2178
      %v2233 = vadd.f32 %v2094, %v2181
      %v2234 = vadd.f32 %v2095, %v2183
      %v2235 = vadd.f32 %v2096, %v2186
      %v2236 = vadd.f32 %v2097, %v2188
      %v2237 = vadd.f32 %v2098, %v2191
      %v2238 = vadd.f32 %v2099, %v2193
      %v2239 = vadd.f32 %v2100, %v2196
      %v2240 = vadd.f32 %v2101, %v2198
      %v2241 = vadd.f32 %v2102, %v2201
      %v2242 = vadd.f32 %v2103, %v2203
      %v2243 = vadd.f32 %v2104, %v2206
      %v2244 = vadd.f32 %v2105, %v2208
      %v2245 = vadd.f32 %v2106, %v2211
      %v2246 = vadd.f32 %v2107, %v2213
      %v2247 = vld [vmem:[%s2] sm:$0x1]
      %v2249 = vperm.slane %v2247, 0
      %v2251 = vadd.f32 %v2215, %v2249
      %v2252 = vadd.f32 %v2216, %v2249
      %v2253 = vadd.f32 %v2217, %v2249
      %v2254 = vadd.f32 %v2218, %v2249
      %v2255 = vadd.f32 %v2219, %v2249
      %v2256 = vadd.f32 %v2220, %v2249
      %v2257 = vadd.f32 %v2221, %v2249
      %v2258 = vadd.f32 %v2222, %v2249
      %v2259 = vadd.f32 %v2223, %v2249
      %v2260 = vadd.f32 %v2224, %v2249
      %v2261 = vadd.f32 %v2225, %v2249
      %v2262 = vadd.f32 %v2226, %v2249
      %v2263 = vadd.f32 %v2227, %v2249
      %v2264 = vadd.f32 %v2228, %v2249
      %v2265 = vadd.f32 %v2229, %v2249
      %v2266 = vadd.f32 %v2230, %v2249
      %v2267 = vadd.f32 %v2231, %v2249
      %v2268 = vadd.f32 %v2232, %v2249
      %v2269 = vadd.f32 %v2233, %v2249
      %v2270 = vadd.f32 %v2234, %v2249
      %v2271 = vadd.f32 %v2235, %v2249
      %v2272 = vadd.f32 %v2236, %v2249
      %v2273 = vadd.f32 %v2237, %v2249
      %v2274 = vadd.f32 %v2238, %v2249
      %v2275 = vadd.f32 %v2239, %v2249
      %v2276 = vadd.f32 %v2240, %v2249
      %v2277 = vadd.f32 %v2241, %v2249
      %v2278 = vadd.f32 %v2242, %v2249
      %v2279 = vadd.f32 %v2243, %v2249
      %v2280 = vadd.f32 %v2244, %v2249
      %v2281 = vadd.f32 %v2245, %v2249
      %v2282 = vadd.f32 %v2246, %v2249
      %2283 = vst [vmem:[%s170] sm:$0xff] %v2251
      %2284 = vst [vmem:[%s170 + $0x8] sm:$0xff] %v2252
      %2285 = vst [vmem:[%s170 + $0x10] sm:$0xff] %v2253
      %2286 = vst [vmem:[%s170 + $0x18] sm:$0xff] %v2254
      %2287 = vst [vmem:[%s170 + $0x20] sm:$0xff] %v2255
      %2288 = vst [vmem:[%s170 + $0x28] sm:$0xff] %v2256
      %2289 = vst [vmem:[%s170 + $0x30] sm:$0xff] %v2257
      %2290 = vst [vmem:[%s170 + $0x38] sm:$0xff] %v2258
      %2291 = vst [vmem:[%s170 + $0x40] sm:$0xff] %v2259
      %2292 = vst [vmem:[%s170 + $0x48] sm:$0xff] %v2260
      %2293 = vst [vmem:[%s170 + $0x50] sm:$0xff] %v2261
      %2294 = vst [vmem:[%s170 + $0x58] sm:$0xff] %v2262
      %2295 = vst [vmem:[%s170 + $0x60] sm:$0xff] %v2263
      %2296 = vst [vmem:[%s170 + $0x68] sm:$0xff] %v2264
      %2297 = vst [vmem:[%s170 + $0x70] sm:$0xff] %v2265
      %2298 = vst [vmem:[%s170 + $0x78] sm:$0xff] %v2266
      %2299 = vst [vmem:[%s170 + $0x80] sm:$0xff] %v2267
      %2300 = vst [vmem:[%s170 + $0x88] sm:$0xff] %v2268
      %2301 = vst [vmem:[%s170 + $0x90] sm:$0xff] %v2269
      %2302 = vst [vmem:[%s170 + $0x98] sm:$0xff] %v2270
      %2303 = vst [vmem:[%s170 + $0xa0] sm:$0xff] %v2271
      %2304 = vst [vmem:[%s170 + $0xa8] sm:$0xff] %v2272
      %2305 = vst [vmem:[%s170 + $0xb0] sm:$0xff] %v2273
      %2306 = vst [vmem:[%s170 + $0xb8] sm:$0xff] %v2274
      %2307 = vst [vmem:[%s170 + $0xc0] sm:$0xff] %v2275
      %2308 = vst [vmem:[%s170 + $0xc8] sm:$0xff] %v2276
      %2309 = vst [vmem:[%s170 + $0xd0] sm:$0xff] %v2277
      %2310 = vst [vmem:[%s170 + $0xd8] sm:$0xff] %v2278
      %2311 = vst [vmem:[%s170 + $0xe0] sm:$0xff] %v2279
      %2312 = vst [vmem:[%s170 + $0xe8] sm:$0xff] %v2280
      %2313 = vst [vmem:[%s170 + $0xf0] sm:$0xff] %v2281
      %2314 = vst [vmem:[%s170 + $0xf8] sm:$0xff] %v2282
      %p2315 = scmp.lt.s32.totalorder %s14, 1
      %s2316 = scalar_select %p2315, %s14, 1
      %s2317 = smul.addr %s2316, 32
      %s2318 = smul.addr %s2317, 8
      %s2319 = scalar_lea.vmem %s3, %s2318
      // Predicated region
      $region33: #{output_conv_pallas.1} parent=31 // pred_check
        %p2320 = pneg %p100
      $region34: #{output_conv_pallas.1} parent=31 // pred_check_branch
        %2322 = sbr.rel (%p2320) target = $region36
      $region35: #{output_conv_pallas.1} parent=31 // pred_region
        _
      $region36: #{output_conv_pallas.1} parent=31 // pred_fallthru
        _
    $region32: #{output_conv_pallas.1} parent=5 // pred_fallthru
      _
    %p2323 = scmp.le.s32.totalorder 2, %s9
    // Predicated region
    $region37: #{output_conv_pallas.1} parent=5 // pred_check
      %p2324 = pneg %p2323
    $region38: #{output_conv_pallas.1} parent=5 // pred_check_branch
      %2326 = sbr.rel (%p2324) target = $region40
    $region39: #{output_conv_pallas.1} parent=5 // pred_region
      %s2327 = ssub.s32 %s9, 2
      // Predicated region
      $region41: #{output_conv_pallas.1} parent=39 // pred_check
        %p2328 = pneg %p106
      $region42: #{output_conv_pallas.1} parent=39 // pred_check_branch
        %2330 = sbr.rel (%p2328) target = $region44
      $region43: #{output_conv_pallas.1} parent=39 // pred_region
        %p2331 = scmp.lt.s32.totalorder %s15, 1
        %s2332 = scalar_select %p2331, %s15, 1
        %s2333 = smul.addr %s2332, 32
        %s2334 = smul.addr %s2333, 8
        %s2335 = scalar_lea.vmem %s3, %s2334
      $region44: #{output_conv_pallas.1} parent=39 // pred_fallthru
        _
    $region40: #{output_conv_pallas.1} parent=5 // pred_fallthru
      _
  $region6: #{output_conv_pallas.1} parent=0 // loop_footer
    %s13 = sadd.s32 1, %s9
  $region7: #{output_conv_pallas.1} parent=0 // loop_footer_branch
    %8 = sbr.rel target = $region3
  $region8: #{output_conv_pallas.1} parent=0 // loop_exit
    _

</llo_original>
